<compile_context>
chip_gen: v7x
topology: tpu7x:2x2x1
jax: 0.10.0
libtpu: 0.0.40
codegen_flags: <defaults>
</compile_context>

<pallas_src>
import jax
import jax.numpy as jnp
import numpy as np
from jax.experimental import pallas as pl
from jax.experimental.pallas import tpu as pltpu


def _make_kernel(B, S, H_pad, P, num_heads, head_dim, lora_scale, compute_dtype):
    attn_scale = float(head_dim) ** -0.5
    BS = B * S

    def kernel(x_ref, wqkv_ref, aqkv_ref, bqkv_ref, wo_ref, bo_ref,
               o_ref, attn_acc):
        x = x_ref[...]                                          # (BS, H) bf16

        # --- fused QKV projection (base + LoRA), bf16 in / f32 accumulate ---
        base = jnp.einsum('sh,ph->sp', x, wqkv_ref[...],
                          preferred_element_type=jnp.float32)   # (BS, 3P)
        lo = jnp.einsum('sh,rh->sr', x, aqkv_ref[...],
                        preferred_element_type=jnp.float32)     # (BS, 3r)
        lo = jnp.einsum('sr,pr->sp', lo.astype(compute_dtype), bqkv_ref[...],
                        preferred_element_type=jnp.float32)     # (BS, 3P)
        qkv = base + lo * lora_scale                            # f32

        # --- multi-head attention: loop over heads, batched over B ---------
        for h in range(num_heads):
            c0, c1 = h * head_dim, (h + 1) * head_dim
            qh = qkv[:, c0:c1].reshape(B, S, head_dim).astype(compute_dtype)
            kh = qkv[:, P + c0:P + c1].reshape(B, S, head_dim).astype(compute_dtype)
            vh = qkv[:, 2 * P + c0:2 * P + c1].reshape(B, S, head_dim).astype(compute_dtype)

            s = jnp.einsum('bqd,bkd->bqk', qh, kh,
                           preferred_element_type=jnp.float32) * attn_scale
            s = s - jnp.max(s, axis=-1, keepdims=True)          # f32 softmax
            p = jnp.exp(s)
            p = p * pl.reciprocal(jnp.sum(p, axis=-1, keepdims=True),
                                  approx=True)
            oh = jnp.einsum('bqk,bkd->bqd', p.astype(compute_dtype), vh,
                            preferred_element_type=jnp.float32)  # (B, S, d)
            # head outputs into VMEM scratch at static column slices
            attn_acc[:, c0:c1] = oh.reshape(BS, head_dim)

        # --- output projection, lane-dense (H_pad multiple of 128) ---------
        attn = attn_acc[...].astype(compute_dtype)              # (BS, P)
        out = jnp.einsum('sp,hp->sh', attn, wo_ref[...],
                         preferred_element_type=jnp.float32) + bo_ref[...]
        o_ref[...] = out                                        # (BS, H_pad)

    return kernel


def lora_self_attention(x, params, *, num_heads: int, lora_scale: float):
    """x: (B, S, H) float32. Returns (B, S, H) float32."""
    B, S, H = x.shape
    P = params['wq'].shape[0]
    r = params['aq'].shape[0]
    head_dim = P // num_heads
    assert head_dim * num_heads == P
    BS = B * S
    H_pad = ((H + 127) // 128) * 128        # lane-dense output store
    compute_dtype = jnp.bfloat16

    # ---- wrapper-side weight fusion / padding (done once, outside kernel) ----
    w_qkv = jnp.concatenate([params['wq'], params['wk'], params['wv']],
                            axis=0).astype(compute_dtype)             # (3P, H)
    a_qkv = jnp.concatenate([params['aq'], params['ak'], params['av']],
                            axis=0).astype(compute_dtype)             # (3r, H)
    b_qkv = jnp.zeros((3 * P, 3 * r), jnp.float32)                    # block-diag
    b_qkv = b_qkv.at[0:P, 0:r].set(params['bq'])
    b_qkv = b_qkv.at[P:2 * P, r:2 * r].set(params['bk'])
    b_qkv = b_qkv.at[2 * P:3 * P, 2 * r:3 * r].set(params['bv'])
    b_qkv = b_qkv.astype(compute_dtype)                               # (3P, 3r)
    wo_pad = jnp.zeros((H_pad, P), jnp.float32).at[:H, :].set(
        params['wo']).astype(compute_dtype)                           # (H_pad, P)
    bo_pad = jnp.zeros((1, H_pad), jnp.float32).at[:, :H].set(params['bo'])

    x_flat = x.reshape(BS, H).astype(compute_dtype)

    kernel = _make_kernel(B, S, H_pad, P, num_heads, head_dim,
                          lora_scale, compute_dtype)

    def full_spec(shape):
        nd = len(shape)
        return pl.BlockSpec(shape, lambda i, _nd=nd: (0,) * _nd)

    args = (x_flat, w_qkv, a_qkv, b_qkv, wo_pad, bo_pad)
    in_specs = [full_spec(a.shape) for a in args]

    # advisory cost estimate for XLA's scheduler
    flops = int(2 * BS * H * 3 * P + 2 * BS * H * 3 * r + 2 * BS * 3 * r * 3 * P
                + 4 * B * num_heads * S * S * head_dim + 2 * BS * P * H_pad)
    transcendentals = int(B * num_heads * S * S)
    bytes_accessed = int(sum(a.size * a.dtype.itemsize for a in args)
                         + BS * H_pad * 4)

    out = pl.pallas_call(
        kernel,
        out_shape=jax.ShapeDtypeStruct((BS, H_pad), jnp.float32),
        grid_spec=pltpu.PrefetchScalarGridSpec(
            num_scalar_prefetch=0,
            grid=(1,),                       # single grid step: whole problem
            in_specs=in_specs,
            out_specs=full_spec((BS, H_pad)),
            scratch_shapes=[pltpu.VMEM((BS, P), jnp.float32)],
        ),
        compiler_params=pltpu.CompilerParams(
            dimension_semantics=("arbitrary",)),
        cost_estimate=pl.CostEstimate(flops=flops,
                                      transcendentals=transcendentals,
                                      bytes_accessed=bytes_accessed),
    )(*args)

    return out[:, :H].reshape(B, S, H)


def _reference(x, params, *, num_heads: int, lora_scale: float):
    """Pure-JAX f32 reference, mirrors the PyTorch semantics."""
    def proj(w, a, b):
        return x @ w.T + (x @ a.T) @ b.T * lora_scale

    q = proj(params['wq'], params['aq'], params['bq'])
    k = proj(params['wk'], params['ak'], params['bk'])
    v = proj(params['wv'], params['av'], params['bv'])

    B, S, P = q.shape
    d = P // num_heads
    scale = d ** -0.5

    def split(t):  # head_to_batch_dim: (B, S, P) -> (B, nH, S, d)
        return t.reshape(B, S, num_heads, d).transpose(0, 2, 1, 3)

    qh, kh, vh = split(q), split(k), split(v)
    s = jnp.einsum('bhqd,bhkd->bhqk', qh, kh) * scale
    p = jax.nn.softmax(s, axis=-1)
    o = jnp.einsum('bhqk,bhkd->bhqd', p, vh)
    o = o.transpose(0, 2, 1, 3).reshape(B, S, P)      # batch_to_head_dim
    return o @ params['wo'].T + params['bo']


if __name__ == "__main__":
    B, S, H = 2, 8, 32          # batch, seq, hidden
    P = 32                       # proj size (to_q.out_features)
    rank, alpha = 8, 8
    num_heads = 4
    lora_scale = alpha / rank

    key = jax.random.PRNGKey(0)
    ks = jax.random.split(key, 12)

    # Deterministic synthetic params (PyTorch shapes: Linear.weight = (out, in)).
    # Note: module __init__ zero-inits lora_B; we use small nonzero values so the
    # LoRA path is actually exercised numerically.
    params = {
        'wq': jax.random.normal(ks[0], (P, H), jnp.float32) * 0.05,
        'wk': jax.random.normal(ks[1], (P, H), jnp.float32) * 0.05,
        'wv': jax.random.normal(ks[2], (P, H), jnp.float32) * 0.05,
        'aq': jax.random.normal(ks[3], (rank, H), jnp.float32) * 0.02,
        'ak': jax.random.normal(ks[4], (rank, H), jnp.float32) * 0.02,
        'av': jax.random.normal(ks[5], (rank, H), jnp.float32) * 0.02,
        'bq': jax.random.normal(ks[6], (P, rank), jnp.float32) * 0.02,
        'bk': jax.random.normal(ks[7], (P, rank), jnp.float32) * 0.02,
        'bv': jax.random.normal(ks[8], (P, rank), jnp.float32) * 0.02,
        'wo': jax.random.normal(ks[9], (H, P), jnp.float32) * 0.05,
        'bo': (jax.random.normal(ks[10], (1, H), jnp.float32) * 0.01),
    }

    x = jax.random.normal(ks[11], (B, S, H), jnp.float32)

    out = lora_self_attention(x, params, num_heads=num_heads,
                              lora_scale=lora_scale)
    out = jax.block_until_ready(out)

    ref = _reference(x, {**params, 'bo': params['bo'][0]},
                     num_heads=num_heads, lora_scale=lora_scale)
    # tolerance loosened vs. previous version: bf16 MXU inputs + approx reciprocal
    np.testing.assert_allclose(np.asarray(out), np.asarray(ref),
                               rtol=2e-2, atol=2e-2)
    print("KERNEL_OK")
</pallas_src>

<mosaic_0001>
module attributes {stable_mosaic.version = 11 : i64} {
  func.func @kernel(%arg0: i32, %arg1: memref<16x32xbf16, #tpu.memory_space<vmem>>, %arg2: memref<96x32xbf16, #tpu.memory_space<vmem>>, %arg3: memref<24x32xbf16, #tpu.memory_space<vmem>>, %arg4: memref<96x24xbf16, #tpu.memory_space<vmem>>, %arg5: memref<128x32xbf16, #tpu.memory_space<vmem>>, %arg6: memref<1x128xf32, #tpu.memory_space<vmem>>, %arg7: memref<16x128xf32, #tpu.memory_space<vmem>>, %arg8: memref<16x32xf32, #tpu.memory_space<vmem>>) attributes {dimension_semantics = [#tpu.dimension_semantics<arbitrary>], iteration_bounds = array<i64: 1>, scalar_prefetch = 0 : i64, scratch_operands = 1 : i64, tpu.core_type = #tpu.core_type<tc>, window_params = [{pipeline_mode = #tpu.pipeline_mode<synchronous>, transform_indices = @transform_0, window_bounds = array<i64: 16, 32>}, {pipeline_mode = #tpu.pipeline_mode<synchronous>, transform_indices = @transform_1, window_bounds = array<i64: 96, 32>}, {pipeline_mode = #tpu.pipeline_mode<synchronous>, transform_indices = @transform_2, window_bounds = array<i64: 24, 32>}, {pipeline_mode = #tpu.pipeline_mode<synchronous>, transform_indices = @transform_3, window_bounds = array<i64: 96, 24>}, {pipeline_mode = #tpu.pipeline_mode<synchronous>, transform_indices = @transform_4, window_bounds = array<i64: 128, 32>}, {pipeline_mode = #tpu.pipeline_mode<synchronous>, transform_indices = @transform_5, window_bounds = array<i64: 1, 128>}, {pipeline_mode = #tpu.pipeline_mode<synchronous>, transform_indices = @transform_6, window_bounds = array<i64: 16, 128>}]} {
    %c0 = arith.constant 0 : index
    %c0_0 = arith.constant 0 : index
    %0 = vector.load %arg1[%c0, %c0_0] : memref<16x32xbf16, #tpu.memory_space<vmem>>, vector<16x32xbf16>
    %c0_1 = arith.constant 0 : index
    %c0_2 = arith.constant 0 : index
    %1 = vector.load %arg2[%c0_1, %c0_2] : memref<96x32xbf16, #tpu.memory_space<vmem>>, vector<96x32xbf16>
    "tpu.trace_start"() <{level = 10 : i32, message = "sh,ph->sp"}> : () -> ()
    %cst = arith.constant dense<0.000000e+00> : vector<16x96xf32>
    %2 = tpu.matmul %0, %1, %cst {dimension_numbers = #tpu.dot_dimension_numbers<[1], [1], [0], [0], [0, 0, 1, 0], [], []>} : vector<16x32xbf16>, vector<96x32xbf16>, vector<16x96xf32> -> vector<16x96xf32>
    "tpu.trace_stop"() : () -> ()
    %c0_3 = arith.constant 0 : index
    %c0_4 = arith.constant 0 : index
    %3 = vector.load %arg3[%c0_3, %c0_4] : memref<24x32xbf16, #tpu.memory_space<vmem>>, vector<24x32xbf16>
    "tpu.trace_start"() <{level = 10 : i32, message = "sh,rh->sr"}> : () -> ()
    %cst_5 = arith.constant dense<0.000000e+00> : vector<16x24xf32>
    %4 = tpu.matmul %0, %3, %cst_5 {dimension_numbers = #tpu.dot_dimension_numbers<[1], [1], [0], [0], [0, 0, 1, 0], [], []>} : vector<16x32xbf16>, vector<24x32xbf16>, vector<16x24xf32> -> vector<16x24xf32>
    "tpu.trace_stop"() : () -> ()
    %5 = arith.truncf %4 : vector<16x24xf32> to vector<16x24xbf16>
    %c0_6 = arith.constant 0 : index
    %c0_7 = arith.constant 0 : index
    %6 = vector.load %arg4[%c0_6, %c0_7] : memref<96x24xbf16, #tpu.memory_space<vmem>>, vector<96x24xbf16>
    "tpu.trace_start"() <{level = 10 : i32, message = "sr,pr->sp"}> : () -> ()
    %cst_8 = arith.constant dense<0.000000e+00> : vector<16x96xf32>
    %7 = tpu.matmul %5, %6, %cst_8 {dimension_numbers = #tpu.dot_dimension_numbers<[1], [1], [0], [0], [0, 0, 1, 0], [], []>} : vector<16x24xbf16>, vector<96x24xbf16>, vector<16x96xf32> -> vector<16x96xf32>
    "tpu.trace_stop"() : () -> ()
    %cst_9 = arith.constant 1.000000e+00 : f32
    %8 = vector.broadcast %cst_9 : f32 to vector<16x96xf32>
    %9 = arith.mulf %7, %8 : vector<16x96xf32>
    %10 = arith.addf %2, %9 : vector<16x96xf32>
    %11 = vector.extract_strided_slice %10 {offsets = [0, 0], sizes = [16, 8], strides = [1, 1]} : vector<16x96xf32> to vector<16x8xf32>
    %12 = vector.shape_cast %11 : vector<16x8xf32> to vector<2x8x8xf32>
    %13 = arith.truncf %12 : vector<2x8x8xf32> to vector<2x8x8xbf16>
    %14 = vector.extract_strided_slice %10 {offsets = [0, 32], sizes = [16, 8], strides = [1, 1]} : vector<16x96xf32> to vector<16x8xf32>
    %15 = vector.shape_cast %14 : vector<16x8xf32> to vector<2x8x8xf32>
    %16 = arith.truncf %15 : vector<2x8x8xf32> to vector<2x8x8xbf16>
    %17 = vector.extract_strided_slice %10 {offsets = [0, 64], sizes = [16, 8], strides = [1, 1]} : vector<16x96xf32> to vector<16x8xf32>
    %18 = vector.shape_cast %17 : vector<16x8xf32> to vector<2x8x8xf32>
    %19 = arith.truncf %18 : vector<2x8x8xf32> to vector<2x8x8xbf16>
    "tpu.trace_start"() <{level = 10 : i32, message = "bqd,bkd->bqk"}> : () -> ()
    %cst_10 = arith.constant dense<0.000000e+00> : vector<2x8x8xf32>
    %20 = tpu.matmul %13, %16, %cst_10 {dimension_numbers = #tpu.dot_dimension_numbers<[2], [2], [1], [1], [0, 0, 0, 1, 1, 1], [0], [0]>} : vector<2x8x8xbf16>, vector<2x8x8xbf16>, vector<2x8x8xf32> -> vector<2x8x8xf32>
    "tpu.trace_stop"() : () -> ()
    %cst_11 = arith.constant 0.353553385 : f32
    %21 = vector.broadcast %cst_11 : f32 to vector<2x8x8xf32>
    %22 = arith.mulf %20, %21 : vector<2x8x8xf32>
    %cst_12 = arith.constant dense<0xFF800000> : vector<2x8xf32>
    %23 = vector.multi_reduction <maximumf>, %22, %cst_12 [2] : vector<2x8x8xf32> to vector<2x8xf32>
    %24 = vector.shape_cast %23 : vector<2x8xf32> to vector<2x8x1xf32>
    %25 = vector.broadcast %24 : vector<2x8x1xf32> to vector<2x8x8xf32>
    %26 = arith.subf %22, %25 : vector<2x8x8xf32>
    %27 = math.exp %26 : vector<2x8x8xf32>
    %cst_13 = arith.constant dense<0.000000e+00> : vector<2x8xf32>
    %28 = vector.multi_reduction <add>, %27, %cst_13 [2] : vector<2x8x8xf32> to vector<2x8xf32>
    %29 = vector.shape_cast %28 : vector<2x8xf32> to vector<2x8x1xf32>
    %30 = tpu.reciprocal %29 {approx = true} : vector<2x8x1xf32> -> vector<2x8x1xf32>
    %31 = vector.broadcast %30 : vector<2x8x1xf32> to vector<2x8x8xf32>
    %32 = arith.mulf %27, %31 : vector<2x8x8xf32>
    %33 = arith.truncf %32 : vector<2x8x8xf32> to vector<2x8x8xbf16>
    "tpu.trace_start"() <{level = 10 : i32, message = "bqk,bkd->bqd"}> : () -> ()
    %cst_14 = arith.constant dense<0.000000e+00> : vector<2x8x8xf32>
    %34 = tpu.matmul %33, %19, %cst_14 {dimension_numbers = #tpu.dot_dimension_numbers<[2], [1], [1], [2], [0, 0, 0, 1, 1, 2], [0], [0]>} : vector<2x8x8xbf16>, vector<2x8x8xbf16>, vector<2x8x8xf32> -> vector<2x8x8xf32>
    "tpu.trace_stop"() : () -> ()
    %35 = vector.shape_cast %34 : vector<2x8x8xf32> to vector<16x8xf32>
    %c0_15 = arith.constant 0 : index
    %c0_16 = arith.constant 0 : index
    %36 = vector.load %arg8[%c0_15, %c0_16] : memref<16x32xf32, #tpu.memory_space<vmem>>, vector<16x8xf32>
    tpu.vector_store %arg8[%c0_15, %c0_16], %35 {strides = array<i32>} : memref<16x32xf32, #tpu.memory_space<vmem>>, vector<16x8xf32>,
    %37 = vector.extract_strided_slice %10 {offsets = [0, 8], sizes = [16, 8], strides = [1, 1]} : vector<16x96xf32> to vector<16x8xf32>
    %38 = vector.shape_cast %37 : vector<16x8xf32> to vector<2x8x8xf32>
    %39 = arith.truncf %38 : vector<2x8x8xf32> to vector<2x8x8xbf16>
    %40 = vector.extract_strided_slice %10 {offsets = [0, 40], sizes = [16, 8], strides = [1, 1]} : vector<16x96xf32> to vector<16x8xf32>
    %41 = vector.shape_cast %40 : vector<16x8xf32> to vector<2x8x8xf32>
    %42 = arith.truncf %41 : vector<2x8x8xf32> to vector<2x8x8xbf16>
    %43 = vector.extract_strided_slice %10 {offsets = [0, 72], sizes = [16, 8], strides = [1, 1]} : vector<16x96xf32> to vector<16x8xf32>
    %44 = vector.shape_cast %43 : vector<16x8xf32> to vector<2x8x8xf32>
    %45 = arith.truncf %44 : vector<2x8x8xf32> to vector<2x8x8xbf16>
    "tpu.trace_start"() <{level = 10 : i32, message = "bqd,bkd->bqk"}> : () -> ()
    %cst_17 = arith.constant dense<0.000000e+00> : vector<2x8x8xf32>
    %46 = tpu.matmul %39, %42, %cst_17 {dimension_numbers = #tpu.dot_dimension_numbers<[2], [2], [1], [1], [0, 0, 0, 1, 1, 1], [0], [0]>} : vector<2x8x8xbf16>, vector<2x8x8xbf16>, vector<2x8x8xf32> -> vector<2x8x8xf32>
    "tpu.trace_stop"() : () -> ()
    %cst_18 = arith.constant 0.353553385 : f32
    %47 = vector.broadcast %cst_18 : f32 to vector<2x8x8xf32>
    %48 = arith.mulf %46, %47 : vector<2x8x8xf32>
    %cst_19 = arith.constant dense<0xFF800000> : vector<2x8xf32>
    %49 = vector.multi_reduction <maximumf>, %48, %cst_19 [2] : vector<2x8x8xf32> to vector<2x8xf32>
    %50 = vector.shape_cast %49 : vector<2x8xf32> to vector<2x8x1xf32>
    %51 = vector.broadcast %50 : vector<2x8x1xf32> to vector<2x8x8xf32>
    %52 = arith.subf %48, %51 : vector<2x8x8xf32>
    %53 = math.exp %52 : vector<2x8x8xf32>
    %cst_20 = arith.constant dense<0.000000e+00> : vector<2x8xf32>
    %54 = vector.multi_reduction <add>, %53, %cst_20 [2] : vector<2x8x8xf32> to vector<2x8xf32>
    %55 = vector.shape_cast %54 : vector<2x8xf32> to vector<2x8x1xf32>
    %56 = tpu.reciprocal %55 {approx = true} : vector<2x8x1xf32> -> vector<2x8x1xf32>
    %57 = vector.broadcast %56 : vector<2x8x1xf32> to vector<2x8x8xf32>
    %58 = arith.mulf %53, %57 : vector<2x8x8xf32>
    %59 = arith.truncf %58 : vector<2x8x8xf32> to vector<2x8x8xbf16>
    "tpu.trace_start"() <{level = 10 : i32, message = "bqk,bkd->bqd"}> : () -> ()
    %cst_21 = arith.constant dense<0.000000e+00> : vector<2x8x8xf32>
    %60 = tpu.matmul %59, %45, %cst_21 {dimension_numbers = #tpu.dot_dimension_numbers<[2], [1], [1], [2], [0, 0, 0, 1, 1, 2], [0], [0]>} : vector<2x8x8xbf16>, vector<2x8x8xbf16>, vector<2x8x8xf32> -> vector<2x8x8xf32>
    "tpu.trace_stop"() : () -> ()
    %61 = vector.shape_cast %60 : vector<2x8x8xf32> to vector<16x8xf32>
    %c0_22 = arith.constant 0 : index
    %c8 = arith.constant 8 : index
    %62 = vector.load %arg8[%c0_22, %c8] : memref<16x32xf32, #tpu.memory_space<vmem>>, vector<16x8xf32>
    tpu.vector_store %arg8[%c0_22, %c8], %61 {strides = array<i32>} : memref<16x32xf32, #tpu.memory_space<vmem>>, vector<16x8xf32>,
    %63 = vector.extract_strided_slice %10 {offsets = [0, 16], sizes = [16, 8], strides = [1, 1]} : vector<16x96xf32> to vector<16x8xf32>
    %64 = vector.shape_cast %63 : vector<16x8xf32> to vector<2x8x8xf32>
    %65 = arith.truncf %64 : vector<2x8x8xf32> to vector<2x8x8xbf16>
    %66 = vector.extract_strided_slice %10 {offsets = [0, 48], sizes = [16, 8], strides = [1, 1]} : vector<16x96xf32> to vector<16x8xf32>
    %67 = vector.shape_cast %66 : vector<16x8xf32> to vector<2x8x8xf32>
    %68 = arith.truncf %67 : vector<2x8x8xf32> to vector<2x8x8xbf16>
    %69 = vector.extract_strided_slice %10 {offsets = [0, 80], sizes = [16, 8], strides = [1, 1]} : vector<16x96xf32> to vector<16x8xf32>
    %70 = vector.shape_cast %69 : vector<16x8xf32> to vector<2x8x8xf32>
    %71 = arith.truncf %70 : vector<2x8x8xf32> to vector<2x8x8xbf16>
    "tpu.trace_start"() <{level = 10 : i32, message = "bqd,bkd->bqk"}> : () -> ()
    %cst_23 = arith.constant dense<0.000000e+00> : vector<2x8x8xf32>
    %72 = tpu.matmul %65, %68, %cst_23 {dimension_numbers = #tpu.dot_dimension_numbers<[2], [2], [1], [1], [0, 0, 0, 1, 1, 1], [0], [0]>} : vector<2x8x8xbf16>, vector<2x8x8xbf16>, vector<2x8x8xf32> -> vector<2x8x8xf32>
    "tpu.trace_stop"() : () -> ()
    %cst_24 = arith.constant 0.353553385 : f32
    %73 = vector.broadcast %cst_24 : f32 to vector<2x8x8xf32>
    %74 = arith.mulf %72, %73 : vector<2x8x8xf32>
    %cst_25 = arith.constant dense<0xFF800000> : vector<2x8xf32>
    %75 = vector.multi_reduction <maximumf>, %74, %cst_25 [2] : vector<2x8x8xf32> to vector<2x8xf32>
    %76 = vector.shape_cast %75 : vector<2x8xf32> to vector<2x8x1xf32>
    %77 = vector.broadcast %76 : vector<2x8x1xf32> to vector<2x8x8xf32>
    %78 = arith.subf %74, %77 : vector<2x8x8xf32>
    %79 = math.exp %78 : vector<2x8x8xf32>
    %cst_26 = arith.constant dense<0.000000e+00> : vector<2x8xf32>
    %80 = vector.multi_reduction <add>, %79, %cst_26 [2] : vector<2x8x8xf32> to vector<2x8xf32>
    %81 = vector.shape_cast %80 : vector<2x8xf32> to vector<2x8x1xf32>
    %82 = tpu.reciprocal %81 {approx = true} : vector<2x8x1xf32> -> vector<2x8x1xf32>
    %83 = vector.broadcast %82 : vector<2x8x1xf32> to vector<2x8x8xf32>
    %84 = arith.mulf %79, %83 : vector<2x8x8xf32>
    %85 = arith.truncf %84 : vector<2x8x8xf32> to vector<2x8x8xbf16>
    "tpu.trace_start"() <{level = 10 : i32, message = "bqk,bkd->bqd"}> : () -> ()
    %cst_27 = arith.constant dense<0.000000e+00> : vector<2x8x8xf32>
    %86 = tpu.matmul %85, %71, %cst_27 {dimension_numbers = #tpu.dot_dimension_numbers<[2], [1], [1], [2], [0, 0, 0, 1, 1, 2], [0], [0]>} : vector<2x8x8xbf16>, vector<2x8x8xbf16>, vector<2x8x8xf32> -> vector<2x8x8xf32>
    "tpu.trace_stop"() : () -> ()
    %87 = vector.shape_cast %86 : vector<2x8x8xf32> to vector<16x8xf32>
    %c0_28 = arith.constant 0 : index
    %c16 = arith.constant 16 : index
    %88 = vector.load %arg8[%c0_28, %c16] : memref<16x32xf32, #tpu.memory_space<vmem>>, vector<16x8xf32>
    tpu.vector_store %arg8[%c0_28, %c16], %87 {strides = array<i32>} : memref<16x32xf32, #tpu.memory_space<vmem>>, vector<16x8xf32>,
    %89 = vector.extract_strided_slice %10 {offsets = [0, 24], sizes = [16, 8], strides = [1, 1]} : vector<16x96xf32> to vector<16x8xf32>
    %90 = vector.shape_cast %89 : vector<16x8xf32> to vector<2x8x8xf32>
    %91 = arith.truncf %90 : vector<2x8x8xf32> to vector<2x8x8xbf16>
    %92 = vector.extract_strided_slice %10 {offsets = [0, 56], sizes = [16, 8], strides = [1, 1]} : vector<16x96xf32> to vector<16x8xf32>
    %93 = vector.shape_cast %92 : vector<16x8xf32> to vector<2x8x8xf32>
    %94 = arith.truncf %93 : vector<2x8x8xf32> to vector<2x8x8xbf16>
    %95 = vector.extract_strided_slice %10 {offsets = [0, 88], sizes = [16, 8], strides = [1, 1]} : vector<16x96xf32> to vector<16x8xf32>
    %96 = vector.shape_cast %95 : vector<16x8xf32> to vector<2x8x8xf32>
    %97 = arith.truncf %96 : vector<2x8x8xf32> to vector<2x8x8xbf16>
    "tpu.trace_start"() <{level = 10 : i32, message = "bqd,bkd->bqk"}> : () -> ()
    %cst_29 = arith.constant dense<0.000000e+00> : vector<2x8x8xf32>
    %98 = tpu.matmul %91, %94, %cst_29 {dimension_numbers = #tpu.dot_dimension_numbers<[2], [2], [1], [1], [0, 0, 0, 1, 1, 1], [0], [0]>} : vector<2x8x8xbf16>, vector<2x8x8xbf16>, vector<2x8x8xf32> -> vector<2x8x8xf32>
    "tpu.trace_stop"() : () -> ()
    %cst_30 = arith.constant 0.353553385 : f32
    %99 = vector.broadcast %cst_30 : f32 to vector<2x8x8xf32>
    %100 = arith.mulf %98, %99 : vector<2x8x8xf32>
    %cst_31 = arith.constant dense<0xFF800000> : vector<2x8xf32>
    %101 = vector.multi_reduction <maximumf>, %100, %cst_31 [2] : vector<2x8x8xf32> to vector<2x8xf32>
    %102 = vector.shape_cast %101 : vector<2x8xf32> to vector<2x8x1xf32>
    %103 = vector.broadcast %102 : vector<2x8x1xf32> to vector<2x8x8xf32>
    %104 = arith.subf %100, %103 : vector<2x8x8xf32>
    %105 = math.exp %104 : vector<2x8x8xf32>
    %cst_32 = arith.constant dense<0.000000e+00> : vector<2x8xf32>
    %106 = vector.multi_reduction <add>, %105, %cst_32 [2] : vector<2x8x8xf32> to vector<2x8xf32>
    %107 = vector.shape_cast %106 : vector<2x8xf32> to vector<2x8x1xf32>
    %108 = tpu.reciprocal %107 {approx = true} : vector<2x8x1xf32> -> vector<2x8x1xf32>
    %109 = vector.broadcast %108 : vector<2x8x1xf32> to vector<2x8x8xf32>
    %110 = arith.mulf %105, %109 : vector<2x8x8xf32>
    %111 = arith.truncf %110 : vector<2x8x8xf32> to vector<2x8x8xbf16>
    "tpu.trace_start"() <{level = 10 : i32, message = "bqk,bkd->bqd"}> : () -> ()
    %cst_33 = arith.constant dense<0.000000e+00> : vector<2x8x8xf32>
    %112 = tpu.matmul %111, %97, %cst_33 {dimension_numbers = #tpu.dot_dimension_numbers<[2], [1], [1], [2], [0, 0, 0, 1, 1, 2], [0], [0]>} : vector<2x8x8xbf16>, vector<2x8x8xbf16>, vector<2x8x8xf32> -> vector<2x8x8xf32>
    "tpu.trace_stop"() : () -> ()
    %113 = vector.shape_cast %112 : vector<2x8x8xf32> to vector<16x8xf32>
    %c0_34 = arith.constant 0 : index
    %c24 = arith.constant 24 : index
    %114 = vector.load %arg8[%c0_34, %c24] : memref<16x32xf32, #tpu.memory_space<vmem>>, vector<16x8xf32>
    tpu.vector_store %arg8[%c0_34, %c24], %113 {strides = array<i32>} : memref<16x32xf32, #tpu.memory_space<vmem>>, vector<16x8xf32>,
    %c0_35 = arith.constant 0 : index
    %c0_36 = arith.constant 0 : index
    %115 = vector.load %arg8[%c0_35, %c0_36] : memref<16x32xf32, #tpu.memory_space<vmem>>, vector<16x32xf32>
    %116 = arith.truncf %115 : vector<16x32xf32> to vector<16x32xbf16>
    %c0_37 = arith.constant 0 : index
    %c0_38 = arith.constant 0 : index
    %117 = vector.load %arg5[%c0_37, %c0_38] : memref<128x32xbf16, #tpu.memory_space<vmem>>, vector<128x32xbf16>
    "tpu.trace_start"() <{level = 10 : i32, message = "sp,hp->sh"}> : () -> ()
    %cst_39 = arith.constant dense<0.000000e+00> : vector<16x128xf32>
    %118 = tpu.matmul %116, %117, %cst_39 {dimension_numbers = #tpu.dot_dimension_numbers<[1], [1], [0], [0], [0, 0, 1, 0], [], []>} : vector<16x32xbf16>, vector<128x32xbf16>, vector<16x128xf32> -> vector<16x128xf32>
    "tpu.trace_stop"() : () -> ()
    %c0_40 = arith.constant 0 : index
    %c0_41 = arith.constant 0 : index
    %119 = vector.load %arg6[%c0_40, %c0_41] : memref<1x128xf32, #tpu.memory_space<vmem>>, vector<1x128xf32>
    %120 = vector.broadcast %119 : vector<1x128xf32> to vector<16x128xf32>
    %121 = arith.addf %118, %120 : vector<16x128xf32>
    %c0_42 = arith.constant 0 : index
    %c0_43 = arith.constant 0 : index
    %122 = vector.load %arg7[%c0_42, %c0_43] : memref<16x128xf32, #tpu.memory_space<vmem>>, vector<16x128xf32>
    tpu.vector_store %arg7[%c0_42, %c0_43], %121 {strides = array<i32>} : memref<16x128xf32, #tpu.memory_space<vmem>>, vector<16x128xf32>,
    return
  }
  func.func @transform_0(%arg0: i32) -> (i32, i32) {
    %c0_i32 = arith.constant 0 : i32
    %c0_i32_0 = arith.constant 0 : i32
    %c0_i32_1 = arith.constant 0 : i32
    return %c0_i32, %c0_i32_0 : i32, i32
  }
  func.func @transform_1(%arg0: i32) -> (i32, i32) {
    %c0_i32 = arith.constant 0 : i32
    %c0_i32_0 = arith.constant 0 : i32
    %c0_i32_1 = arith.constant 0 : i32
    return %c0_i32, %c0_i32_0 : i32, i32
  }
  func.func @transform_2(%arg0: i32) -> (i32, i32) {
    %c0_i32 = arith.constant 0 : i32
    %c0_i32_0 = arith.constant 0 : i32
    %c0_i32_1 = arith.constant 0 : i32
    return %c0_i32, %c0_i32_0 : i32, i32
  }
  func.func @transform_3(%arg0: i32) -> (i32, i32) {
    %c0_i32 = arith.constant 0 : i32
    %c0_i32_0 = arith.constant 0 : i32
    %c0_i32_1 = arith.constant 0 : i32
    return %c0_i32, %c0_i32_0 : i32, i32
  }
  func.func @transform_4(%arg0: i32) -> (i32, i32) {
    %c0_i32 = arith.constant 0 : i32
    %c0_i32_0 = arith.constant 0 : i32
    %c0_i32_1 = arith.constant 0 : i32
    return %c0_i32, %c0_i32_0 : i32, i32
  }
  func.func @transform_5(%arg0: i32) -> (i32, i32) {
    %c0_i32 = arith.constant 0 : i32
    %c0_i32_0 = arith.constant 0 : i32
    %c0_i32_1 = arith.constant 0 : i32
    return %c0_i32, %c0_i32_0 : i32, i32
  }
  func.func @transform_6(%arg0: i32) -> (i32, i32) {
    %c0_i32 = arith.constant 0 : i32
    %c0_i32_0 = arith.constant 0 : i32
    %c0_i32_1 = arith.constant 0 : i32
    return %c0_i32, %c0_i32_0 : i32, i32
  }
}

</mosaic_0001>

<llo_original>
// kernel: tpu_custom_call.1
$region0: #{tpu_custom_call.1}
  #allocation0 [shape = 'u32[]', space=smem, size = 0x4, offset = 0x4, fixed_abs, tag = 'smem constant byte address 0x4 - core index']
  #allocation1 [shape = 'u32[144,128]{1,0:T(1,128)}', space=vmem, size = 0x12000, scoped, tag = 'internal scratch']
  #allocation2 [shape = 'f32[16,32]{1,0:T(8,128)}', space=vmem, size = 0x2000, scoped, tag = 'scratch operand']
  %s0 = inlined_call_operand.vmem [shape: bf16[16,32], index: 0, kind: input, shape index: {}]
  %s1 = inlined_call_operand.vmem [shape: bf16[96,32], index: 1, kind: input, shape index: {}]
  %s2 = inlined_call_operand.vmem [shape: bf16[24,32], index: 2, kind: input, shape index: {}]
  %s3 = inlined_call_operand.vmem [shape: bf16[96,24], index: 3, kind: input, shape index: {}]
  %s4 = inlined_call_operand.vmem [shape: bf16[128,32], index: 4, kind: input, shape index: {}]
  %s5 = inlined_call_operand.vmem [shape: f32[1,128], index: 5, kind: input, shape index: {}]
  %s6 = inlined_call_operand.hbm [shape: f32[16,128], index: 6, kind: output, shape index: {}]
  %s7 = sld [smem:[#allocation0]]
  $region34: #{tpu_custom_call.1} parent=0
    _
  %s9 = ssub.s32 1, %s7
  %s10 = scalar_select 0, %s9, %s7
  $region1: #{tpu_custom_call.1} parent=0
    #allocation3 [shape = 'u8[8192]{0}', space=vmem, size = 0x2000, scoped, tag = 'output window, operand 0, single buffered']
    #allocation4 [shape = 's32[1]{0}', space=sflag, size = 0x4, scoped, tag = 'scoped memory for tpu_custom_call.1']
    %11 = vsyncpa [#allocation4], 0
    // Predicated region
    $region2: #{tpu_custom_call.1} parent=1 // pred_check
      _
    $region3: #{tpu_custom_call.1} parent=1 // pred_check_branch
      %13 = sbr.rel (0) target = $region5
    $region4: #{tpu_custom_call.1} parent=1 // pred_region
      _
    $region5: #{tpu_custom_call.1} parent=1 // pred_fallthru
      _
    // Predicated region
    $region6: #{tpu_custom_call.1} parent=1 // pred_check
      _
    $region7: #{tpu_custom_call.1} parent=1 // pred_check_branch
      %15 = sbr.rel (0) target = $region9
    $region8: #{tpu_custom_call.1} parent=1 // pred_region
      _
    $region9: #{tpu_custom_call.1} parent=1 // pred_fallthru
      _
    // Predicated region
    $region10: #{tpu_custom_call.1} parent=1 // pred_check
      _
    $region11: #{tpu_custom_call.1} parent=1 // pred_check_branch
      %17 = sbr.rel (0) target = $region13
    $region12: #{tpu_custom_call.1} parent=1 // pred_region
      _
    $region13: #{tpu_custom_call.1} parent=1 // pred_fallthru
      _
    // Predicated region
    $region14: #{tpu_custom_call.1} parent=1 // pred_check
      _
    $region15: #{tpu_custom_call.1} parent=1 // pred_check_branch
      %19 = sbr.rel (0) target = $region17
    $region16: #{tpu_custom_call.1} parent=1 // pred_region
      _
    $region17: #{tpu_custom_call.1} parent=1 // pred_fallthru
      _
    // Predicated region
    $region18: #{tpu_custom_call.1} parent=1 // pred_check
      _
    $region19: #{tpu_custom_call.1} parent=1 // pred_check_branch
      %21 = sbr.rel (0) target = $region21
    $region20: #{tpu_custom_call.1} parent=1 // pred_region
      _
    $region21: #{tpu_custom_call.1} parent=1 // pred_fallthru
      _
    // Predicated region
    $region22: #{tpu_custom_call.1} parent=1 // pred_check
      _
    $region23: #{tpu_custom_call.1} parent=1 // pred_check_branch
      %23 = sbr.rel (0) target = $region25
    $region24: #{tpu_custom_call.1} parent=1 // pred_region
      _
    $region25: #{tpu_custom_call.1} parent=1 // pred_fallthru
      _
    %v25 = vld [vmem:[%s0] sm:$0xf]
    %v26 = vld [vmem:[%s0 + $0x4] sm:$0xf]
    %v27 = vld [vmem:[%s1] sm:$0xf]
    %v28 = vld [vmem:[%s1 + $0x4] sm:$0xf]
    %v29 = vld [vmem:[%s1 + $0x8] sm:$0xf]
    %v30 = vld [vmem:[%s1 + $0xc] sm:$0xf]
    %v31 = vld [vmem:[%s1 + $0x10] sm:$0xf]
    %v32 = vld [vmem:[%s1 + $0x14] sm:$0xf]
    %v33 = vld [vmem:[%s1 + $0x18] sm:$0xf]
    %v34 = vld [vmem:[%s1 + $0x1c] sm:$0xf]
    %v35 = vld [vmem:[%s1 + $0x20] sm:$0xf]
    %v36 = vld [vmem:[%s1 + $0x24] sm:$0xf]
    %v37 = vld [vmem:[%s1 + $0x28] sm:$0xf]
    %v38 = vld [vmem:[%s1 + $0x2c] sm:$0xf]
    %v39 = vld [vmem:[%s2] sm:$0xf]
    %v40 = vld [vmem:[%s2 + $0x4] sm:$0xf]
    %v41 = vld [vmem:[%s2 + $0x8] sm:$0xf]
    %v44 = vunpack.c.l.b16 %v25
    %v45 = vunpack.c.l.b16 %v26
    %v46 = vpack.c.b16 %v45, %v44
    %v50 = vunpack.c.l.b16 %v39
    %v51 = vunpack.c.l.b16 %v40
    %v52 = vunpack.c.l.b16 %v41
    %v53 = vpack.c.b16 %v51, %v50
    %v54 = vpack.c.b16 %v52, %v52
    %vm55 = vcmask 261120
    %v57 = vsel %vm55, %v46, 0
    %v60 = vsel %vm55, %v53, 0
    %v63 = vsel %vm55, %v54, 0
    %65 = vmatprep.subr.bf16.mxu0 0
    %66 = vmatpush1.bf16.xpose.msra.mxu0 %v60
    %67 = vmatprep.subr.bf16.mxu0 0
    %68 = vmatpush1.bf16.xpose.msra.mxu0 %v63
    %69 = vmatprep.subr.bf16.mxu0 0
    %70 = vmatpush1.bf16.xpose.msra.mxu0 0
    %71 = vmatprep.subr.bf16.mxu0 0
    %72 = vmatpush1.bf16.xpose.msra.mxu0 0
    %73 = vmatprep.subr.bf16.mxu0 0
    %74 = vmatpush1.bf16.xpose.msra.mxu0 0
    %75 = vmatprep.subr.bf16.mxu0 0
    %76 = vmatpush1.bf16.xpose.msra.mxu0 0
    %77 = vmatprep.subr.bf16.mxu0 0
    %78 = vmatpush1.bf16.xpose.msra.mxu0 0
    %79 = vmatprep.subr.bf16.mxu0 0
    %80 = vmatpush1.bf16.xpose.msra.mxu0 0
    %81 = vmatprep.subr.bf16.mxu0 0
    %82 = vmatpush1.bf16.xpose.msra.mxu0 0
    %83 = vmatprep.subr.bf16.mxu0 0
    %84 = vmatpush1.bf16.xpose.msra.mxu0 0
    %85 = vmatprep.subr.bf16.mxu0 0
    %86 = vmatpush1.bf16.xpose.msra.mxu0 0
    %87 = vmatprep.subr.bf16.mxu0 0
    %88 = vmatpush1.bf16.xpose.msra.mxu0 0
    %89 = vmatprep.subr.bf16.mxu0 0
    %90 = vmatpush1.bf16.xpose.msra.mxu0 0
    %91 = vmatprep.subr.bf16.mxu0 0
    %92 = vmatpush1.bf16.xpose.msra.mxu0 0
    %93 = vmatprep.subr.bf16.mxu0 0
    %94 = vmatpush1.bf16.xpose.msra.mxu0 0
    %95 = vmatprep.subr.bf16.mxu0 0
    %96 = vmatpush1.bf16.xpose.msra.mxu0 0
    %97 = vmatprep.mubr.bf16.mxu0 0
    %98 = vmatmul.mubr.bf16.gmra.mrb[0].mxu0 %v57
    %v99 = vpop.f32.mrb[0].mxu0
    %v100 = vadd.f32 0.0, %v99
    %v101 = vpop.f32.mrb[0].mxu0
    %v102 = vpop.f32.mrb[0].mxu0
    %v103 = vadd.f32 0.0, %v102
    %v104 = vpop.f32.mrb[0].mxu0
    %105 = vdwg.mxu0
    %v106 = vpack.c.bf16 %v103, %v100
    %v107 = vld [vmem:[%s3] sm:$0xf]
    %v108 = vld [vmem:[%s3 + $0x4] sm:$0xf]
    %v109 = vld [vmem:[%s3 + $0x8] sm:$0xf]
    %v110 = vld [vmem:[%s3 + $0xc] sm:$0xf]
    %v111 = vld [vmem:[%s3 + $0x10] sm:$0xf]
    %v112 = vld [vmem:[%s3 + $0x14] sm:$0xf]
    %v113 = vld [vmem:[%s3 + $0x18] sm:$0xf]
    %v114 = vld [vmem:[%s3 + $0x1c] sm:$0xf]
    %v115 = vld [vmem:[%s3 + $0x20] sm:$0xf]
    %v116 = vld [vmem:[%s3 + $0x24] sm:$0xf]
    %v117 = vld [vmem:[%s3 + $0x28] sm:$0xf]
    %v118 = vld [vmem:[%s3 + $0x2c] sm:$0xf]
    %v131 = vunpack.c.l.b16 %v107
    %v132 = vunpack.c.l.b16 %v108
    %v133 = vunpack.c.l.b16 %v109
    %v134 = vunpack.c.l.b16 %v110
    %v135 = vunpack.c.l.b16 %v111
    %v136 = vunpack.c.l.b16 %v112
    %v137 = vunpack.c.l.b16 %v113
    %v138 = vunpack.c.l.b16 %v114
    %v139 = vunpack.c.l.b16 %v115
    %v140 = vunpack.c.l.b16 %v116
    %v141 = vunpack.c.l.b16 %v117
    %v142 = vunpack.c.l.b16 %v118
    %v143 = vpack.c.b16 %v132, %v131
    %v144 = vpack.c.b16 %v134, %v133
    %v145 = vpack.c.b16 %v136, %v135
    %v146 = vpack.c.b16 %v138, %v137
    %v147 = vpack.c.b16 %v140, %v139
    %v148 = vpack.c.b16 %v142, %v141
    %vm149 = vcmask 195584
    %v151 = vsel %vm149, %v106, 0
    %v154 = vsel %vm149, %v143, 0
    %v157 = vsel %vm149, %v144, 0
    %v160 = vsel %vm149, %v145, 0
    %v163 = vsel %vm149, %v146, 0
    %v166 = vsel %vm149, %v147, 0
    %v169 = vsel %vm149, %v148, 0
    %171 = vmatprep.subr.bf16.mxu0 0
    %172 = vmatpush1.bf16.xpose.msra.mxu0 %v154
    %173 = vmatprep.subr.bf16.mxu0 0
    %174 = vmatpush1.bf16.xpose.msra.mxu0 %v157
    %175 = vmatprep.subr.bf16.mxu0 0
    %176 = vmatpush1.bf16.xpose.msra.mxu0 %v160
    %177 = vmatprep.subr.bf16.mxu0 0
    %178 = vmatpush1.bf16.xpose.msra.mxu0 %v163
    %179 = vmatprep.subr.bf16.mxu0 0
    %180 = vmatpush1.bf16.xpose.msra.mxu0 %v166
    %181 = vmatprep.subr.bf16.mxu0 0
    %182 = vmatpush1.bf16.xpose.msra.mxu0 %v169
    %183 = vmatprep.subr.bf16.mxu0 0
    %184 = vmatpush1.bf16.xpose.msra.mxu0 0
    %185 = vmatprep.subr.bf16.mxu0 0
    %186 = vmatpush1.bf16.xpose.msra.mxu0 0
    %187 = vmatprep.subr.bf16.mxu0 0
    %188 = vmatpush1.bf16.xpose.msra.mxu0 0
    %189 = vmatprep.subr.bf16.mxu0 0
    %190 = vmatpush1.bf16.xpose.msra.mxu0 0
    %191 = vmatprep.subr.bf16.mxu0 0
    %192 = vmatpush1.bf16.xpose.msra.mxu0 0
    %193 = vmatprep.subr.bf16.mxu0 0
    %194 = vmatpush1.bf16.xpose.msra.mxu0 0
    %195 = vmatprep.subr.bf16.mxu0 0
    %196 = vmatpush1.bf16.xpose.msra.mxu0 0
    %197 = vmatprep.subr.bf16.mxu0 0
    %198 = vmatpush1.bf16.xpose.msra.mxu0 0
    %199 = vmatprep.subr.bf16.mxu0 0
    %200 = vmatpush1.bf16.xpose.msra.mxu0 0
    %201 = vmatprep.subr.bf16.mxu0 0
    %202 = vmatpush1.bf16.xpose.msra.mxu0 0
    %203 = vmatprep.mubr.bf16.mxu0 0
    %204 = vmatmul.mubr.bf16.gmra.mrb[0].mxu0 %v151
    %v205 = vpop.f32.mrb[0].mxu0
    %v206 = vadd.f32 0.0, %v205
    %v207 = vpop.f32.mrb[0].mxu0
    %v208 = vpop.f32.mrb[0].mxu0
    %v209 = vadd.f32 0.0, %v208
    %v210 = vpop.f32.mrb[0].mxu0
    %211 = vdwg.mxu0
    %v224 = vunpack.c.l.b16 %v27
    %v225 = vunpack.c.l.b16 %v28
    %v226 = vunpack.c.l.b16 %v29
    %v227 = vunpack.c.l.b16 %v30
    %v228 = vunpack.c.l.b16 %v31
    %v229 = vunpack.c.l.b16 %v32
    %v230 = vunpack.c.l.b16 %v33
    %v231 = vunpack.c.l.b16 %v34
    %v232 = vunpack.c.l.b16 %v35
    %v233 = vunpack.c.l.b16 %v36
    %v234 = vunpack.c.l.b16 %v37
    %v235 = vunpack.c.l.b16 %v38
    %v236 = vpack.c.b16 %v225, %v224
    %v237 = vpack.c.b16 %v227, %v226
    %v238 = vpack.c.b16 %v229, %v228
    %v239 = vpack.c.b16 %v231, %v230
    %v240 = vpack.c.b16 %v233, %v232
    %v241 = vpack.c.b16 %v235, %v234
    %v243 = vsel %vm55, %v236, 0
    %v246 = vsel %vm55, %v237, 0
    %v249 = vsel %vm55, %v238, 0
    %v252 = vsel %vm55, %v239, 0
    %v255 = vsel %vm55, %v240, 0
    %v258 = vsel %vm55, %v241, 0
    %260 = vmatprep.subr.bf16.mxu0 0
    %261 = vmatpush1.bf16.xpose.msra.mxu0 %v243
    %262 = vmatprep.subr.bf16.mxu0 0
    %263 = vmatpush1.bf16.xpose.msra.mxu0 %v246
    %264 = vmatprep.subr.bf16.mxu0 0
    %265 = vmatpush1.bf16.xpose.msra.mxu0 %v249
    %266 = vmatprep.subr.bf16.mxu0 0
    %267 = vmatpush1.bf16.xpose.msra.mxu0 %v252
    %268 = vmatprep.subr.bf16.mxu0 0
    %269 = vmatpush1.bf16.xpose.msra.mxu0 %v255
    %270 = vmatprep.subr.bf16.mxu0 0
    %271 = vmatpush1.bf16.xpose.msra.mxu0 %v258
    %272 = vmatprep.subr.bf16.mxu0 0
    %273 = vmatpush1.bf16.xpose.msra.mxu0 0
    %274 = vmatprep.subr.bf16.mxu0 0
    %275 = vmatpush1.bf16.xpose.msra.mxu0 0
    %276 = vmatprep.subr.bf16.mxu0 0
    %277 = vmatpush1.bf16.xpose.msra.mxu0 0
    %278 = vmatprep.subr.bf16.mxu0 0
    %279 = vmatpush1.bf16.xpose.msra.mxu0 0
    %280 = vmatprep.subr.bf16.mxu0 0
    %281 = vmatpush1.bf16.xpose.msra.mxu0 0
    %282 = vmatprep.subr.bf16.mxu0 0
    %283 = vmatpush1.bf16.xpose.msra.mxu0 0
    %284 = vmatprep.subr.bf16.mxu0 0
    %285 = vmatpush1.bf16.xpose.msra.mxu0 0
    %286 = vmatprep.subr.bf16.mxu0 0
    %287 = vmatpush1.bf16.xpose.msra.mxu0 0
    %288 = vmatprep.subr.bf16.mxu0 0
    %289 = vmatpush1.bf16.xpose.msra.mxu0 0
    %290 = vmatprep.subr.bf16.mxu0 0
    %291 = vmatpush1.bf16.xpose.msra.mxu0 0
    %292 = vmatprep.mubr.bf16.mxu0 0
    %293 = vmatmul.mubr.bf16.gmra.mrb[0].mxu0 %v57
    %v294 = vpop.f32.mrb[0].mxu0
    %v295 = vadd.f32 %v206, %v294
    %v296 = vpop.f32.mrb[0].mxu0
    %v297 = vpop.f32.mrb[0].mxu0
    %v298 = vadd.f32 %v209, %v297
    %v299 = vpop.f32.mrb[0].mxu0
    %300 = vdwg.mxu0
    %v301 = vpack.c.bf16 %v295, %v295
    %v302 = vpack.c.bf16 %v298, %v298
    %304 = vrot.lane.b32.xlu0 %v301, 96
    %v305 = vpop.permute.xlu0 %304
    %vm306 = vcmask 64512
    %v308 = vsel %vm306, %v301, 0
    %v311 = vsel %vm306, %v305, 0
    %313 = vmatprep.subr.bf16.mxu0 0
    %314 = vmatpush1.bf16.xpose.msra.mxu0 %v311
    %315 = vmatprep.subr.bf16.mxu0 0
    %316 = vmatpush1.bf16.xpose.msra.mxu0 0
    %317 = vmatprep.subr.bf16.mxu0 0
    %318 = vmatpush1.bf16.xpose.msra.mxu0 0
    %319 = vmatprep.subr.bf16.mxu0 0
    %320 = vmatpush1.bf16.xpose.msra.mxu0 0
    %321 = vmatprep.subr.bf16.mxu0 0
    %322 = vmatpush1.bf16.xpose.msra.mxu0 0
    %323 = vmatprep.subr.bf16.mxu0 0
    %324 = vmatpush1.bf16.xpose.msra.mxu0 0
    %325 = vmatprep.subr.bf16.mxu0 0
    %326 = vmatpush1.bf16.xpose.msra.mxu0 0
    %327 = vmatprep.subr.bf16.mxu0 0
    %328 = vmatpush1.bf16.xpose.msra.mxu0 0
    %329 = vmatprep.subr.bf16.mxu0 0
    %330 = vmatpush1.bf16.xpose.msra.mxu0 0
    %331 = vmatprep.subr.bf16.mxu0 0
    %332 = vmatpush1.bf16.xpose.msra.mxu0 0
    %333 = vmatprep.subr.bf16.mxu0 0
    %334 = vmatpush1.bf16.xpose.msra.mxu0 0
    %335 = vmatprep.subr.bf16.mxu0 0
    %336 = vmatpush1.bf16.xpose.msra.mxu0 0
    %337 = vmatprep.subr.bf16.mxu0 0
    %338 = vmatpush1.bf16.xpose.msra.mxu0 0
    %339 = vmatprep.subr.bf16.mxu0 0
    %340 = vmatpush1.bf16.xpose.msra.mxu0 0
    %341 = vmatprep.subr.bf16.mxu0 0
    %342 = vmatpush1.bf16.xpose.msra.mxu0 0
    %343 = vmatprep.subr.bf16.mxu0 0
    %344 = vmatpush1.bf16.xpose.msra.mxu0 0
    %345 = vmatprep.mubr.bf16.mxu0 0
    %346 = vmatmul.mubr.bf16.gmra.mrb[0].mxu0 %v308
    %v347 = vpop.f32.mrb[0].mxu0
    %v348 = vadd.f32 0.0, %v347
    %v349 = vpop.f32.mrb[0].mxu0
    %v350 = vpop.f32.mrb[0].mxu0
    %v351 = vpop.f32.mrb[0].mxu0
    %352 = vdwg.mxu0
    %354 = vrot.lane.b32.xlu0 %v302, 96
    %v355 = vpop.permute.xlu0 %354
    %v357 = vsel %vm306, %v302, 0
    %v360 = vsel %vm306, %v355, 0
    %362 = vmatprep.subr.bf16.mxu0 0
    %363 = vmatpush1.bf16.xpose.msra.mxu0 %v360
    %364 = vmatprep.subr.bf16.mxu0 0
    %365 = vmatpush1.bf16.xpose.msra.mxu0 0
    %366 = vmatprep.subr.bf16.mxu0 0
    %367 = vmatpush1.bf16.xpose.msra.mxu0 0
    %368 = vmatprep.subr.bf16.mxu0 0
    %369 = vmatpush1.bf16.xpose.msra.mxu0 0
    %370 = vmatprep.subr.bf16.mxu0 0
    %371 = vmatpush1.bf16.xpose.msra.mxu0 0
    %372 = vmatprep.subr.bf16.mxu0 0
    %373 = vmatpush1.bf16.xpose.msra.mxu0 0
    %374 = vmatprep.subr.bf16.mxu0 0
    %375 = vmatpush1.bf16.xpose.msra.mxu0 0
    %376 = vmatprep.subr.bf16.mxu0 0
    %377 = vmatpush1.bf16.xpose.msra.mxu0 0
    %378 = vmatprep.subr.bf16.mxu0 0
    %379 = vmatpush1.bf16.xpose.msra.mxu0 0
    %380 = vmatprep.subr.bf16.mxu0 0
    %381 = vmatpush1.bf16.xpose.msra.mxu0 0
    %382 = vmatprep.subr.bf16.mxu0 0
    %383 = vmatpush1.bf16.xpose.msra.mxu0 0
    %384 = vmatprep.subr.bf16.mxu0 0
    %385 = vmatpush1.bf16.xpose.msra.mxu0 0
    %386 = vmatprep.subr.bf16.mxu0 0
    %387 = vmatpush1.bf16.xpose.msra.mxu0 0
    %388 = vmatprep.subr.bf16.mxu0 0
    %389 = vmatpush1.bf16.xpose.msra.mxu0 0
    %390 = vmatprep.subr.bf16.mxu0 0
    %391 = vmatpush1.bf16.xpose.msra.mxu0 0
    %392 = vmatprep.subr.bf16.mxu0 0
    %393 = vmatpush1.bf16.xpose.msra.mxu0 0
    %394 = vmatprep.mubr.bf16.mxu0 0
    %395 = vmatmul.mubr.bf16.gmra.mrb[0].mxu0 %v357
    %v396 = vpop.f32.mrb[0].mxu0
    %v397 = vadd.f32 0.0, %v396
    %v398 = vpop.f32.mrb[0].mxu0
    %v399 = vpop.f32.mrb[0].mxu0
    %v400 = vpop.f32.mrb[0].mxu0
    %401 = vdwg.mxu0
    %v402 = vmul.f32 %v348, 0.35355338
    %v403 = vmul.f32 %v397, 0.35355338
    %v404 = vsel %vm306, %v402, -inf
    %405 = vmax.xlane.f32.xlu0 %v404
    %v406 = vpop.xlane.xlu0 %405
    %v407 = vsel %vm306, %v403, -inf
    %408 = vmax.xlane.f32.xlu0 %v407
    %v409 = vpop.xlane.xlu0 %408
    %v410 = vsub.f32 %v402, %v406
    %v411 = vsub.f32 %v403, %v409
    %v412 = vmul.f32 %v410, 1.442695
    %v413 = vpow.pop %v412
    %v414 = vmul.f32 %v411, 1.442695
    %v415 = vpow.pop %v414
    %v416 = vsel %vm306, %v413, 0.0
    %417 = vadd.xlane.f32.xlu0 %v416
    %v418 = vpop.xlane.xlu0 %417
    %v419 = vsel %vm306, %v415, 0.0
    %420 = vadd.xlane.f32.xlu0 %v419
    %v421 = vpop.xlane.xlu0 %420
    %v422 = vrcp.pop %v418
    %v423 = vrcp.pop %v421
    %v424 = vmul.f32 %v413, %v422
    %v425 = vmul.f32 %v415, %v423
    %v426 = vpack.c.bf16 %v424, %v424
    %v427 = vpack.c.bf16 %v425, %v425
    %428 = vrot.lane.b32.xlu0 %v301, 64
    %v429 = vpop.permute.xlu0 %428
    %v431 = vsel %vm306, %v426, 0
    %vm433 = vcmask 1043456
    %v435 = vsel %vm433, %v429, 0
    %437 = vmatprep.subr.bf16.mxu0 0
    %438 = vmatpush1.bf16.msra.mxu0 %v435
    %439 = vmatprep.subr.bf16.mxu0 0
    %440 = vmatpush1.bf16.msra.mxu0 0
    %441 = vmatprep.subr.bf16.mxu0 0
    %442 = vmatpush1.bf16.msra.mxu0 0
    %443 = vmatprep.subr.bf16.mxu0 0
    %444 = vmatpush1.bf16.msra.mxu0 0
    %445 = vmatprep.subr.bf16.mxu0 0
    %446 = vmatpush1.bf16.msra.mxu0 0
    %447 = vmatprep.subr.bf16.mxu0 0
    %448 = vmatpush1.bf16.msra.mxu0 0
    %449 = vmatprep.subr.bf16.mxu0 0
    %450 = vmatpush1.bf16.msra.mxu0 0
    %451 = vmatprep.subr.bf16.mxu0 0
    %452 = vmatpush1.bf16.msra.mxu0 0
    %453 = vmatprep.subr.bf16.mxu0 0
    %454 = vmatpush1.bf16.msra.mxu0 0
    %455 = vmatprep.subr.bf16.mxu0 0
    %456 = vmatpush1.bf16.msra.mxu0 0
    %457 = vmatprep.subr.bf16.mxu0 0
    %458 = vmatpush1.bf16.msra.mxu0 0
    %459 = vmatprep.subr.bf16.mxu0 0
    %460 = vmatpush1.bf16.msra.mxu0 0
    %461 = vmatprep.subr.bf16.mxu0 0
    %462 = vmatpush1.bf16.msra.mxu0 0
    %463 = vmatprep.subr.bf16.mxu0 0
    %464 = vmatpush1.bf16.msra.mxu0 0
    %465 = vmatprep.subr.bf16.mxu0 0
    %466 = vmatpush1.bf16.msra.mxu0 0
    %467 = vmatprep.subr.bf16.mxu0 0
    %468 = vmatpush1.bf16.msra.mxu0 0
    %469 = vmatprep.mubr.bf16.mxu0 0
    %470 = vmatmul.mubr.bf16.gmra.mrb[0].mxu0 %v431
    %v471 = vpop.f32.mrb[0].mxu0
    %v472 = vadd.f32 0.0, %v471
    %v473 = vpop.f32.mrb[0].mxu0
    %v474 = vpop.f32.mrb[0].mxu0
    %v475 = vpop.f32.mrb[0].mxu0
    %476 = vdwg.mxu0
    %477 = vrot.lane.b32.xlu0 %v302, 64
    %v478 = vpop.permute.xlu0 %477
    %v480 = vsel %vm306, %v427, 0
    %v483 = vsel %vm433, %v478, 0
    %485 = vmatprep.subr.bf16.mxu0 0
    %486 = vmatpush1.bf16.msra.mxu0 %v483
    %487 = vmatprep.subr.bf16.mxu0 0
    %488 = vmatpush1.bf16.msra.mxu0 0
    %489 = vmatprep.subr.bf16.mxu0 0
    %490 = vmatpush1.bf16.msra.mxu0 0
    %491 = vmatprep.subr.bf16.mxu0 0
    %492 = vmatpush1.bf16.msra.mxu0 0
    %493 = vmatprep.subr.bf16.mxu0 0
    %494 = vmatpush1.bf16.msra.mxu0 0
    %495 = vmatprep.subr.bf16.mxu0 0
    %496 = vmatpush1.bf16.msra.mxu0 0
    %497 = vmatprep.subr.bf16.mxu0 0
    %498 = vmatpush1.bf16.msra.mxu0 0
    %499 = vmatprep.subr.bf16.mxu0 0
    %500 = vmatpush1.bf16.msra.mxu0 0
    %501 = vmatprep.subr.bf16.mxu0 0
    %502 = vmatpush1.bf16.msra.mxu0 0
    %503 = vmatprep.subr.bf16.mxu0 0
    %504 = vmatpush1.bf16.msra.mxu0 0
    %505 = vmatprep.subr.bf16.mxu0 0
    %506 = vmatpush1.bf16.msra.mxu0 0
    %507 = vmatprep.subr.bf16.mxu0 0
    %508 = vmatpush1.bf16.msra.mxu0 0
    %509 = vmatprep.subr.bf16.mxu0 0
    %510 = vmatpush1.bf16.msra.mxu0 0
    %511 = vmatprep.subr.bf16.mxu0 0
    %512 = vmatpush1.bf16.msra.mxu0 0
    %513 = vmatprep.subr.bf16.mxu0 0
    %514 = vmatpush1.bf16.msra.mxu0 0
    %515 = vmatprep.subr.bf16.mxu0 0
    %516 = vmatpush1.bf16.msra.mxu0 0
    %517 = vmatprep.mubr.bf16.mxu0 0
    %518 = vmatmul.mubr.bf16.gmra.mrb[0].mxu0 %v480
    %v519 = vpop.f32.mrb[0].mxu0
    %v520 = vadd.f32 0.0, %v519
    %v521 = vpop.f32.mrb[0].mxu0
    %v522 = vpop.f32.mrb[0].mxu0
    %v523 = vpop.f32.mrb[0].mxu0
    %524 = vdwg.mxu0
    %525 = vst.msk [vmem:[#allocation2] sm:$0xff] %vm306, %v472
    %526 = vst.msk [vmem:[#allocation2 + $0x8] sm:$0xff] %vm306, %v520
    %527 = vrot.lane.b32.xlu0 %v301, 120
    %v528 = vpop.permute.xlu0 %527
    %529 = vrot.lane.b32.xlu0 %v301, 88
    %v530 = vpop.permute.xlu0 %529
    %v532 = vsel %vm306, %v528, 0
    %v535 = vsel %vm306, %v530, 0
    %537 = vmatprep.subr.bf16.mxu0 0
    %538 = vmatpush1.bf16.xpose.msra.mxu0 %v535
    %539 = vmatprep.subr.bf16.mxu0 0
    %540 = vmatpush1.bf16.xpose.msra.mxu0 0
    %541 = vmatprep.subr.bf16.mxu0 0
    %542 = vmatpush1.bf16.xpose.msra.mxu0 0
    %543 = vmatprep.subr.bf16.mxu0 0
    %544 = vmatpush1.bf16.xpose.msra.mxu0 0
    %545 = vmatprep.subr.bf16.mxu0 0
    %546 = vmatpush1.bf16.xpose.msra.mxu0 0
    %547 = vmatprep.subr.bf16.mxu0 0
    %548 = vmatpush1.bf16.xpose.msra.mxu0 0
    %549 = vmatprep.subr.bf16.mxu0 0
    %550 = vmatpush1.bf16.xpose.msra.mxu0 0
    %551 = vmatprep.subr.bf16.mxu0 0
    %552 = vmatpush1.bf16.xpose.msra.mxu0 0
    %553 = vmatprep.subr.bf16.mxu0 0
    %554 = vmatpush1.bf16.xpose.msra.mxu0 0
    %555 = vmatprep.subr.bf16.mxu0 0
    %556 = vmatpush1.bf16.xpose.msra.mxu0 0
    %557 = vmatprep.subr.bf16.mxu0 0
    %558 = vmatpush1.bf16.xpose.msra.mxu0 0
    %559 = vmatprep.subr.bf16.mxu0 0
    %560 = vmatpush1.bf16.xpose.msra.mxu0 0
    %561 = vmatprep.subr.bf16.mxu0 0
    %562 = vmatpush1.bf16.xpose.msra.mxu0 0
    %563 = vmatprep.subr.bf16.mxu0 0
    %564 = vmatpush1.bf16.xpose.msra.mxu0 0
    %565 = vmatprep.subr.bf16.mxu0 0
    %566 = vmatpush1.bf16.xpose.msra.mxu0 0
    %567 = vmatprep.subr.bf16.mxu0 0
    %568 = vmatpush1.bf16.xpose.msra.mxu0 0
    %569 = vmatprep.mubr.bf16.mxu0 0
    %570 = vmatmul.mubr.bf16.gmra.mrb[0].mxu0 %v532
    %v571 = vpop.f32.mrb[0].mxu0
    %v572 = vadd.f32 0.0, %v571
    %v573 = vpop.f32.mrb[0].mxu0
    %v574 = vpop.f32.mrb[0].mxu0
    %v575 = vpop.f32.mrb[0].mxu0
    %576 = vdwg.mxu0
    %577 = vrot.lane.b32.xlu0 %v302, 120
    %v578 = vpop.permute.xlu0 %577
    %579 = vrot.lane.b32.xlu0 %v302, 88
    %v580 = vpop.permute.xlu0 %579
    %v582 = vsel %vm306, %v578, 0
    %v585 = vsel %vm306, %v580, 0
    %587 = vmatprep.subr.bf16.mxu0 0
    %588 = vmatpush1.bf16.xpose.msra.mxu0 %v585
    %589 = vmatprep.subr.bf16.mxu0 0
    %590 = vmatpush1.bf16.xpose.msra.mxu0 0
    %591 = vmatprep.subr.bf16.mxu0 0
    %592 = vmatpush1.bf16.xpose.msra.mxu0 0
    %593 = vmatprep.subr.bf16.mxu0 0
    %594 = vmatpush1.bf16.xpose.msra.mxu0 0
    %595 = vmatprep.subr.bf16.mxu0 0
    %596 = vmatpush1.bf16.xpose.msra.mxu0 0
    %597 = vmatprep.subr.bf16.mxu0 0
    %598 = vmatpush1.bf16.xpose.msra.mxu0 0
    %599 = vmatprep.subr.bf16.mxu0 0
    %600 = vmatpush1.bf16.xpose.msra.mxu0 0
    %601 = vmatprep.subr.bf16.mxu0 0
    %602 = vmatpush1.bf16.xpose.msra.mxu0 0
    %603 = vmatprep.subr.bf16.mxu0 0
    %604 = vmatpush1.bf16.xpose.msra.mxu0 0
    %605 = vmatprep.subr.bf16.mxu0 0
    %606 = vmatpush1.bf16.xpose.msra.mxu0 0
    %607 = vmatprep.subr.bf16.mxu0 0
    %608 = vmatpush1.bf16.xpose.msra.mxu0 0
    %609 = vmatprep.subr.bf16.mxu0 0
    %610 = vmatpush1.bf16.xpose.msra.mxu0 0
    %611 = vmatprep.subr.bf16.mxu0 0
    %612 = vmatpush1.bf16.xpose.msra.mxu0 0
    %613 = vmatprep.subr.bf16.mxu0 0
    %614 = vmatpush1.bf16.xpose.msra.mxu0 0
    %615 = vmatprep.subr.bf16.mxu0 0
    %616 = vmatpush1.bf16.xpose.msra.mxu0 0
    %617 = vmatprep.subr.bf16.mxu0 0
    %618 = vmatpush1.bf16.xpose.msra.mxu0 0
    %619 = vmatprep.mubr.bf16.mxu0 0
    %620 = vmatmul.mubr.bf16.gmra.mrb[0].mxu0 %v582
    %v621 = vpop.f32.mrb[0].mxu0
    %v622 = vadd.f32 0.0, %v621
    %v623 = vpop.f32.mrb[0].mxu0
    %v624 = vpop.f32.mrb[0].mxu0
    %v625 = vpop.f32.mrb[0].mxu0
    %626 = vdwg.mxu0
    %v627 = vmul.f32 %v572, 0.35355338
    %v628 = vmul.f32 %v622, 0.35355338
    %v629 = vsel %vm306, %v627, -inf
    %630 = vmax.xlane.f32.xlu0 %v629
    %v631 = vpop.xlane.xlu0 %630
    %v632 = vsel %vm306, %v628, -inf
    %633 = vmax.xlane.f32.xlu0 %v632
    %v634 = vpop.xlane.xlu0 %633
    %v635 = vsub.f32 %v627, %v631
    %v636 = vsub.f32 %v628, %v634
    %v637 = vmul.f32 %v635, 1.442695
    %v638 = vpow.pop %v637
    %v639 = vmul.f32 %v636, 1.442695
    %v640 = vpow.pop %v639
    %v641 = vsel %vm306, %v638, 0.0
    %642 = vadd.xlane.f32.xlu0 %v641
    %v643 = vpop.xlane.xlu0 %642
    %v644 = vsel %vm306, %v640, 0.0
    %645 = vadd.xlane.f32.xlu0 %v644
    %v646 = vpop.xlane.xlu0 %645
    %v647 = vrcp.pop %v643
    %v648 = vrcp.pop %v646
    %v649 = vmul.f32 %v638, %v647
    %v650 = vmul.f32 %v640, %v648
    %v651 = vpack.c.bf16 %v649, %v649
    %v652 = vpack.c.bf16 %v650, %v650
    %653 = vrot.lane.b32.xlu0 %v301, 56
    %v654 = vpop.permute.xlu0 %653
    %v656 = vsel %vm306, %v651, 0
    %v659 = vsel %vm433, %v654, 0
    %661 = vmatprep.subr.bf16.mxu0 0
    %662 = vmatpush1.bf16.msra.mxu0 %v659
    %663 = vmatprep.subr.bf16.mxu0 0
    %664 = vmatpush1.bf16.msra.mxu0 0
    %665 = vmatprep.subr.bf16.mxu0 0
    %666 = vmatpush1.bf16.msra.mxu0 0
    %667 = vmatprep.subr.bf16.mxu0 0
    %668 = vmatpush1.bf16.msra.mxu0 0
    %669 = vmatprep.subr.bf16.mxu0 0
    %670 = vmatpush1.bf16.msra.mxu0 0
    %671 = vmatprep.subr.bf16.mxu0 0
    %672 = vmatpush1.bf16.msra.mxu0 0
    %673 = vmatprep.subr.bf16.mxu0 0
    %674 = vmatpush1.bf16.msra.mxu0 0
    %675 = vmatprep.subr.bf16.mxu0 0
    %676 = vmatpush1.bf16.msra.mxu0 0
    %677 = vmatprep.subr.bf16.mxu0 0
    %678 = vmatpush1.bf16.msra.mxu0 0
    %679 = vmatprep.subr.bf16.mxu0 0
    %680 = vmatpush1.bf16.msra.mxu0 0
    %681 = vmatprep.subr.bf16.mxu0 0
    %682 = vmatpush1.bf16.msra.mxu0 0
    %683 = vmatprep.subr.bf16.mxu0 0
    %684 = vmatpush1.bf16.msra.mxu0 0
    %685 = vmatprep.subr.bf16.mxu0 0
    %686 = vmatpush1.bf16.msra.mxu0 0
    %687 = vmatprep.subr.bf16.mxu0 0
    %688 = vmatpush1.bf16.msra.mxu0 0
    %689 = vmatprep.subr.bf16.mxu0 0
    %690 = vmatpush1.bf16.msra.mxu0 0
    %691 = vmatprep.subr.bf16.mxu0 0
    %692 = vmatpush1.bf16.msra.mxu0 0
    %693 = vmatprep.mubr.bf16.mxu0 0
    %694 = vmatmul.mubr.bf16.gmra.mrb[0].mxu0 %v656
    %v695 = vpop.f32.mrb[0].mxu0
    %v696 = vadd.f32 0.0, %v695
    %v697 = vpop.f32.mrb[0].mxu0
    %v698 = vpop.f32.mrb[0].mxu0
    %v699 = vpop.f32.mrb[0].mxu0
    %700 = vdwg.mxu0
    %701 = vrot.lane.b32.xlu0 %v302, 56
    %v702 = vpop.permute.xlu0 %701
    %v704 = vsel %vm306, %v652, 0
    %v707 = vsel %vm433, %v702, 0
    %709 = vmatprep.subr.bf16.mxu0 0
    %710 = vmatpush1.bf16.msra.mxu0 %v707
    %711 = vmatprep.subr.bf16.mxu0 0
    %712 = vmatpush1.bf16.msra.mxu0 0
    %713 = vmatprep.subr.bf16.mxu0 0
    %714 = vmatpush1.bf16.msra.mxu0 0
    %715 = vmatprep.subr.bf16.mxu0 0
    %716 = vmatpush1.bf16.msra.mxu0 0
    %717 = vmatprep.subr.bf16.mxu0 0
    %718 = vmatpush1.bf16.msra.mxu0 0
    %719 = vmatprep.subr.bf16.mxu0 0
    %720 = vmatpush1.bf16.msra.mxu0 0
    %721 = vmatprep.subr.bf16.mxu0 0
    %722 = vmatpush1.bf16.msra.mxu0 0
    %723 = vmatprep.subr.bf16.mxu0 0
    %724 = vmatpush1.bf16.msra.mxu0 0
    %725 = vmatprep.subr.bf16.mxu0 0
    %726 = vmatpush1.bf16.msra.mxu0 0
    %727 = vmatprep.subr.bf16.mxu0 0
    %728 = vmatpush1.bf16.msra.mxu0 0
    %729 = vmatprep.subr.bf16.mxu0 0
    %730 = vmatpush1.bf16.msra.mxu0 0
    %731 = vmatprep.subr.bf16.mxu0 0
    %732 = vmatpush1.bf16.msra.mxu0 0
    %733 = vmatprep.subr.bf16.mxu0 0
    %734 = vmatpush1.bf16.msra.mxu0 0
    %735 = vmatprep.subr.bf16.mxu0 0
    %736 = vmatpush1.bf16.msra.mxu0 0
    %737 = vmatprep.subr.bf16.mxu0 0
    %738 = vmatpush1.bf16.msra.mxu0 0
    %739 = vmatprep.subr.bf16.mxu0 0
    %740 = vmatpush1.bf16.msra.mxu0 0
    %741 = vmatprep.mubr.bf16.mxu0 0
    %742 = vmatmul.mubr.bf16.gmra.mrb[0].mxu0 %v704
    %v743 = vpop.f32.mrb[0].mxu0
    %v744 = vadd.f32 0.0, %v743
    %v745 = vpop.f32.mrb[0].mxu0
    %v746 = vpop.f32.mrb[0].mxu0
    %v747 = vpop.f32.mrb[0].mxu0
    %748 = vdwg.mxu0
    %751 = vrot.lane.b32.xlu0 %v696, 8
    %v752 = vpop.permute.xlu0 %751
    %753 = vrot.lane.b32.xlu0 %v744, 8
    %v754 = vpop.permute.xlu0 %753
    %vm757 = vcmask 130112
    %758 = vst.msk [vmem:[#allocation2] sm:$0xff] %vm757, %v752
    %759 = vst.msk [vmem:[#allocation2 + $0x8] sm:$0xff] %vm757, %v754
    %760 = vrot.lane.b32.xlu0 %v301, 112
    %v761 = vpop.permute.xlu0 %760
    %762 = vrot.lane.b32.xlu0 %v301, 80
    %v763 = vpop.permute.xlu0 %762
    %v765 = vsel %vm306, %v761, 0
    %v768 = vsel %vm306, %v763, 0
    %770 = vmatprep.subr.bf16.mxu0 0
    %771 = vmatpush1.bf16.xpose.msra.mxu0 %v768
    %772 = vmatprep.subr.bf16.mxu0 0
    %773 = vmatpush1.bf16.xpose.msra.mxu0 0
    %774 = vmatprep.subr.bf16.mxu0 0
    %775 = vmatpush1.bf16.xpose.msra.mxu0 0
    %776 = vmatprep.subr.bf16.mxu0 0
    %777 = vmatpush1.bf16.xpose.msra.mxu0 0
    %778 = vmatprep.subr.bf16.mxu0 0
    %779 = vmatpush1.bf16.xpose.msra.mxu0 0
    %780 = vmatprep.subr.bf16.mxu0 0
    %781 = vmatpush1.bf16.xpose.msra.mxu0 0
    %782 = vmatprep.subr.bf16.mxu0 0
    %783 = vmatpush1.bf16.xpose.msra.mxu0 0
    %784 = vmatprep.subr.bf16.mxu0 0
    %785 = vmatpush1.bf16.xpose.msra.mxu0 0
    %786 = vmatprep.subr.bf16.mxu0 0
    %787 = vmatpush1.bf16.xpose.msra.mxu0 0
    %788 = vmatprep.subr.bf16.mxu0 0
    %789 = vmatpush1.bf16.xpose.msra.mxu0 0
    %790 = vmatprep.subr.bf16.mxu0 0
    %791 = vmatpush1.bf16.xpose.msra.mxu0 0
    %792 = vmatprep.subr.bf16.mxu0 0
    %793 = vmatpush1.bf16.xpose.msra.mxu0 0
    %794 = vmatprep.subr.bf16.mxu0 0
    %795 = vmatpush1.bf16.xpose.msra.mxu0 0
    %796 = vmatprep.subr.bf16.mxu0 0
    %797 = vmatpush1.bf16.xpose.msra.mxu0 0
    %798 = vmatprep.subr.bf16.mxu0 0
    %799 = vmatpush1.bf16.xpose.msra.mxu0 0
    %800 = vmatprep.subr.bf16.mxu0 0
    %801 = vmatpush1.bf16.xpose.msra.mxu0 0
    %802 = vmatprep.mubr.bf16.mxu0 0
    %803 = vmatmul.mubr.bf16.gmra.mrb[0].mxu0 %v765
    %v804 = vpop.f32.mrb[0].mxu0
    %v805 = vadd.f32 0.0, %v804
    %v806 = vpop.f32.mrb[0].mxu0
    %v807 = vpop.f32.mrb[0].mxu0
    %v808 = vpop.f32.mrb[0].mxu0
    %809 = vdwg.mxu0
    %810 = vrot.lane.b32.xlu0 %v302, 112
    %v811 = vpop.permute.xlu0 %810
    %812 = vrot.lane.b32.xlu0 %v302, 80
    %v813 = vpop.permute.xlu0 %812
    %v815 = vsel %vm306, %v811, 0
    %v818 = vsel %vm306, %v813, 0
    %820 = vmatprep.subr.bf16.mxu0 0
    %821 = vmatpush1.bf16.xpose.msra.mxu0 %v818
    %822 = vmatprep.subr.bf16.mxu0 0
    %823 = vmatpush1.bf16.xpose.msra.mxu0 0
    %824 = vmatprep.subr.bf16.mxu0 0
    %825 = vmatpush1.bf16.xpose.msra.mxu0 0
    %826 = vmatprep.subr.bf16.mxu0 0
    %827 = vmatpush1.bf16.xpose.msra.mxu0 0
    %828 = vmatprep.subr.bf16.mxu0 0
    %829 = vmatpush1.bf16.xpose.msra.mxu0 0
    %830 = vmatprep.subr.bf16.mxu0 0
    %831 = vmatpush1.bf16.xpose.msra.mxu0 0
    %832 = vmatprep.subr.bf16.mxu0 0
    %833 = vmatpush1.bf16.xpose.msra.mxu0 0
    %834 = vmatprep.subr.bf16.mxu0 0
    %835 = vmatpush1.bf16.xpose.msra.mxu0 0
    %836 = vmatprep.subr.bf16.mxu0 0
    %837 = vmatpush1.bf16.xpose.msra.mxu0 0
    %838 = vmatprep.subr.bf16.mxu0 0
    %839 = vmatpush1.bf16.xpose.msra.mxu0 0
    %840 = vmatprep.subr.bf16.mxu0 0
    %841 = vmatpush1.bf16.xpose.msra.mxu0 0
    %842 = vmatprep.subr.bf16.mxu0 0
    %843 = vmatpush1.bf16.xpose.msra.mxu0 0
    %844 = vmatprep.subr.bf16.mxu0 0
    %845 = vmatpush1.bf16.xpose.msra.mxu0 0
    %846 = vmatprep.subr.bf16.mxu0 0
    %847 = vmatpush1.bf16.xpose.msra.mxu0 0
    %848 = vmatprep.subr.bf16.mxu0 0
    %849 = vmatpush1.bf16.xpose.msra.mxu0 0
    %850 = vmatprep.subr.bf16.mxu0 0
    %851 = vmatpush1.bf16.xpose.msra.mxu0 0
    %852 = vmatprep.mubr.bf16.mxu0 0
    %853 = vmatmul.mubr.bf16.gmra.mrb[0].mxu0 %v815
    %v854 = vpop.f32.mrb[0].mxu0
    %v855 = vadd.f32 0.0, %v854
    %v856 = vpop.f32.mrb[0].mxu0
    %v857 = vpop.f32.mrb[0].mxu0
    %v858 = vpop.f32.mrb[0].mxu0
    %859 = vdwg.mxu0
    %v860 = vmul.f32 %v805, 0.35355338
    %v861 = vmul.f32 %v855, 0.35355338
    %v862 = vsel %vm306, %v860, -inf
    %863 = vmax.xlane.f32.xlu0 %v862
    %v864 = vpop.xlane.xlu0 %863
    %v865 = vsel %vm306, %v861, -inf
    %866 = vmax.xlane.f32.xlu0 %v865
    %v867 = vpop.xlane.xlu0 %866
    %v868 = vsub.f32 %v860, %v864
    %v869 = vsub.f32 %v861, %v867
    %v870 = vmul.f32 %v868, 1.442695
    %v871 = vpow.pop %v870
    %v872 = vmul.f32 %v869, 1.442695
    %v873 = vpow.pop %v872
    %v874 = vsel %vm306, %v871, 0.0
    %875 = vadd.xlane.f32.xlu0 %v874
    %v876 = vpop.xlane.xlu0 %875
    %v877 = vsel %vm306, %v873, 0.0
    %878 = vadd.xlane.f32.xlu0 %v877
    %v879 = vpop.xlane.xlu0 %878
    %v880 = vrcp.pop %v876
    %v881 = vrcp.pop %v879
    %v882 = vmul.f32 %v871, %v880
    %v883 = vmul.f32 %v873, %v881
    %v884 = vpack.c.bf16 %v882, %v882
    %v885 = vpack.c.bf16 %v883, %v883
    %886 = vrot.lane.b32.xlu0 %v301, 48
    %v887 = vpop.permute.xlu0 %886
    %v889 = vsel %vm306, %v884, 0
    %v892 = vsel %vm433, %v887, 0
    %894 = vmatprep.subr.bf16.mxu0 0
    %895 = vmatpush1.bf16.msra.mxu0 %v892
    %896 = vmatprep.subr.bf16.mxu0 0
    %897 = vmatpush1.bf16.msra.mxu0 0
    %898 = vmatprep.subr.bf16.mxu0 0
    %899 = vmatpush1.bf16.msra.mxu0 0
    %900 = vmatprep.subr.bf16.mxu0 0
    %901 = vmatpush1.bf16.msra.mxu0 0
    %902 = vmatprep.subr.bf16.mxu0 0
    %903 = vmatpush1.bf16.msra.mxu0 0
    %904 = vmatprep.subr.bf16.mxu0 0
    %905 = vmatpush1.bf16.msra.mxu0 0
    %906 = vmatprep.subr.bf16.mxu0 0
    %907 = vmatpush1.bf16.msra.mxu0 0
    %908 = vmatprep.subr.bf16.mxu0 0
    %909 = vmatpush1.bf16.msra.mxu0 0
    %910 = vmatprep.subr.bf16.mxu0 0
    %911 = vmatpush1.bf16.msra.mxu0 0
    %912 = vmatprep.subr.bf16.mxu0 0
    %913 = vmatpush1.bf16.msra.mxu0 0
    %914 = vmatprep.subr.bf16.mxu0 0
    %915 = vmatpush1.bf16.msra.mxu0 0
    %916 = vmatprep.subr.bf16.mxu0 0
    %917 = vmatpush1.bf16.msra.mxu0 0
    %918 = vmatprep.subr.bf16.mxu0 0
    %919 = vmatpush1.bf16.msra.mxu0 0
    %920 = vmatprep.subr.bf16.mxu0 0
    %921 = vmatpush1.bf16.msra.mxu0 0
    %922 = vmatprep.subr.bf16.mxu0 0
    %923 = vmatpush1.bf16.msra.mxu0 0
    %924 = vmatprep.subr.bf16.mxu0 0
    %925 = vmatpush1.bf16.msra.mxu0 0
    %926 = vmatprep.mubr.bf16.mxu0 0
    %927 = vmatmul.mubr.bf16.gmra.mrb[0].mxu0 %v889
    %v928 = vpop.f32.mrb[0].mxu0
    %v929 = vadd.f32 0.0, %v928
    %v930 = vpop.f32.mrb[0].mxu0
    %v931 = vpop.f32.mrb[0].mxu0
    %v932 = vpop.f32.mrb[0].mxu0
    %933 = vdwg.mxu0
    %934 = vrot.lane.b32.xlu0 %v302, 48
    %v935 = vpop.permute.xlu0 %934
    %v937 = vsel %vm306, %v885, 0
    %v940 = vsel %vm433, %v935, 0
    %942 = vmatprep.subr.bf16.mxu0 0
    %943 = vmatpush1.bf16.msra.mxu0 %v940
    %944 = vmatprep.subr.bf16.mxu0 0
    %945 = vmatpush1.bf16.msra.mxu0 0
    %946 = vmatprep.subr.bf16.mxu0 0
    %947 = vmatpush1.bf16.msra.mxu0 0
    %948 = vmatprep.subr.bf16.mxu0 0
    %949 = vmatpush1.bf16.msra.mxu0 0
    %950 = vmatprep.subr.bf16.mxu0 0
    %951 = vmatpush1.bf16.msra.mxu0 0
    %952 = vmatprep.subr.bf16.mxu0 0
    %953 = vmatpush1.bf16.msra.mxu0 0
    %954 = vmatprep.subr.bf16.mxu0 0
    %955 = vmatpush1.bf16.msra.mxu0 0
    %956 = vmatprep.subr.bf16.mxu0 0
    %957 = vmatpush1.bf16.msra.mxu0 0
    %958 = vmatprep.subr.bf16.mxu0 0
    %959 = vmatpush1.bf16.msra.mxu0 0
    %960 = vmatprep.subr.bf16.mxu0 0
    %961 = vmatpush1.bf16.msra.mxu0 0
    %962 = vmatprep.subr.bf16.mxu0 0
    %963 = vmatpush1.bf16.msra.mxu0 0
    %964 = vmatprep.subr.bf16.mxu0 0
    %965 = vmatpush1.bf16.msra.mxu0 0
    %966 = vmatprep.subr.bf16.mxu0 0
    %967 = vmatpush1.bf16.msra.mxu0 0
    %968 = vmatprep.subr.bf16.mxu0 0
    %969 = vmatpush1.bf16.msra.mxu0 0
    %970 = vmatprep.subr.bf16.mxu0 0
    %971 = vmatpush1.bf16.msra.mxu0 0
    %972 = vmatprep.subr.bf16.mxu0 0
    %973 = vmatpush1.bf16.msra.mxu0 0
    %974 = vmatprep.mubr.bf16.mxu0 0
    %975 = vmatmul.mubr.bf16.gmra.mrb[0].mxu0 %v937
    %v976 = vpop.f32.mrb[0].mxu0
    %v977 = vadd.f32 0.0, %v976
    %v978 = vpop.f32.mrb[0].mxu0
    %v979 = vpop.f32.mrb[0].mxu0
    %v980 = vpop.f32.mrb[0].mxu0
    %981 = vdwg.mxu0
    %984 = vrot.lane.b32.xlu0 %v929, 16
    %v985 = vpop.permute.xlu0 %984
    %986 = vrot.lane.b32.xlu0 %v977, 16
    %v987 = vpop.permute.xlu0 %986
    %vm990 = vcmask 195712
    %991 = vst.msk [vmem:[#allocation2] sm:$0xff] %vm990, %v985
    %992 = vst.msk [vmem:[#allocation2 + $0x8] sm:$0xff] %vm990, %v987
    %993 = vrot.lane.b32.xlu0 %v301, 104
    %v994 = vpop.permute.xlu0 %993
    %995 = vrot.lane.b32.xlu0 %v301, 72
    %v996 = vpop.permute.xlu0 %995
    %v998 = vsel %vm306, %v994, 0
    %v1001 = vsel %vm306, %v996, 0
    %1003 = vmatprep.subr.bf16.mxu0 0
    %1004 = vmatpush1.bf16.xpose.msra.mxu0 %v1001
    %1005 = vmatprep.subr.bf16.mxu0 0
    %1006 = vmatpush1.bf16.xpose.msra.mxu0 0
    %1007 = vmatprep.subr.bf16.mxu0 0
    %1008 = vmatpush1.bf16.xpose.msra.mxu0 0
    %1009 = vmatprep.subr.bf16.mxu0 0
    %1010 = vmatpush1.bf16.xpose.msra.mxu0 0
    %1011 = vmatprep.subr.bf16.mxu0 0
    %1012 = vmatpush1.bf16.xpose.msra.mxu0 0
    %1013 = vmatprep.subr.bf16.mxu0 0
    %1014 = vmatpush1.bf16.xpose.msra.mxu0 0
    %1015 = vmatprep.subr.bf16.mxu0 0
    %1016 = vmatpush1.bf16.xpose.msra.mxu0 0
    %1017 = vmatprep.subr.bf16.mxu0 0
    %1018 = vmatpush1.bf16.xpose.msra.mxu0 0
    %1019 = vmatprep.subr.bf16.mxu0 0
    %1020 = vmatpush1.bf16.xpose.msra.mxu0 0
    %1021 = vmatprep.subr.bf16.mxu0 0
    %1022 = vmatpush1.bf16.xpose.msra.mxu0 0
    %1023 = vmatprep.subr.bf16.mxu0 0
    %1024 = vmatpush1.bf16.xpose.msra.mxu0 0
    %1025 = vmatprep.subr.bf16.mxu0 0
    %1026 = vmatpush1.bf16.xpose.msra.mxu0 0
    %1027 = vmatprep.subr.bf16.mxu0 0
    %1028 = vmatpush1.bf16.xpose.msra.mxu0 0
    %1029 = vmatprep.subr.bf16.mxu0 0
    %1030 = vmatpush1.bf16.xpose.msra.mxu0 0
    %1031 = vmatprep.subr.bf16.mxu0 0
    %1032 = vmatpush1.bf16.xpose.msra.mxu0 0
    %1033 = vmatprep.subr.bf16.mxu0 0
    %1034 = vmatpush1.bf16.xpose.msra.mxu0 0
    %1035 = vmatprep.mubr.bf16.mxu0 0
    %1036 = vmatmul.mubr.bf16.gmra.mrb[0].mxu0 %v998
    %v1037 = vpop.f32.mrb[0].mxu0
    %v1038 = vadd.f32 0.0, %v1037
    %v1039 = vpop.f32.mrb[0].mxu0
    %v1040 = vpop.f32.mrb[0].mxu0
    %v1041 = vpop.f32.mrb[0].mxu0
    %1042 = vdwg.mxu0
    %1043 = vrot.lane.b32.xlu0 %v302, 104
    %v1044 = vpop.permute.xlu0 %1043
    %1045 = vrot.lane.b32.xlu0 %v302, 72
    %v1046 = vpop.permute.xlu0 %1045
    %v1048 = vsel %vm306, %v1044, 0
    %v1051 = vsel %vm306, %v1046, 0
    %1053 = vmatprep.subr.bf16.mxu0 0
    %1054 = vmatpush1.bf16.xpose.msra.mxu0 %v1051
    %1055 = vmatprep.subr.bf16.mxu0 0
    %1056 = vmatpush1.bf16.xpose.msra.mxu0 0
    %1057 = vmatprep.subr.bf16.mxu0 0
    %1058 = vmatpush1.bf16.xpose.msra.mxu0 0
    %1059 = vmatprep.subr.bf16.mxu0 0
    %1060 = vmatpush1.bf16.xpose.msra.mxu0 0
    %1061 = vmatprep.subr.bf16.mxu0 0
    %1062 = vmatpush1.bf16.xpose.msra.mxu0 0
    %1063 = vmatprep.subr.bf16.mxu0 0
    %1064 = vmatpush1.bf16.xpose.msra.mxu0 0
    %1065 = vmatprep.subr.bf16.mxu0 0
    %1066 = vmatpush1.bf16.xpose.msra.mxu0 0
    %1067 = vmatprep.subr.bf16.mxu0 0
    %1068 = vmatpush1.bf16.xpose.msra.mxu0 0
    %1069 = vmatprep.subr.bf16.mxu0 0
    %1070 = vmatpush1.bf16.xpose.msra.mxu0 0
    %1071 = vmatprep.subr.bf16.mxu0 0
    %1072 = vmatpush1.bf16.xpose.msra.mxu0 0
    %1073 = vmatprep.subr.bf16.mxu0 0
    %1074 = vmatpush1.bf16.xpose.msra.mxu0 0
    %1075 = vmatprep.subr.bf16.mxu0 0
    %1076 = vmatpush1.bf16.xpose.msra.mxu0 0
    %1077 = vmatprep.subr.bf16.mxu0 0
    %1078 = vmatpush1.bf16.xpose.msra.mxu0 0
    %1079 = vmatprep.subr.bf16.mxu0 0
    %1080 = vmatpush1.bf16.xpose.msra.mxu0 0
    %1081 = vmatprep.subr.bf16.mxu0 0
    %1082 = vmatpush1.bf16.xpose.msra.mxu0 0
    %1083 = vmatprep.subr.bf16.mxu0 0
    %1084 = vmatpush1.bf16.xpose.msra.mxu0 0
    %1085 = vmatprep.mubr.bf16.mxu0 0
    %1086 = vmatmul.mubr.bf16.gmra.mrb[0].mxu0 %v1048
    %v1087 = vpop.f32.mrb[0].mxu0
    %v1088 = vadd.f32 0.0, %v1087
    %v1089 = vpop.f32.mrb[0].mxu0
    %v1090 = vpop.f32.mrb[0].mxu0
    %v1091 = vpop.f32.mrb[0].mxu0
    %1092 = vdwg.mxu0
    %v1093 = vmul.f32 %v1038, 0.35355338
    %v1094 = vmul.f32 %v1088, 0.35355338
    %v1095 = vsel %vm306, %v1093, -inf
    %1096 = vmax.xlane.f32.xlu0 %v1095
    %v1097 = vpop.xlane.xlu0 %1096
    %v1098 = vsel %vm306, %v1094, -inf
    %1099 = vmax.xlane.f32.xlu0 %v1098
    %v1100 = vpop.xlane.xlu0 %1099
    %v1101 = vsub.f32 %v1093, %v1097
    %v1102 = vsub.f32 %v1094, %v1100
    %v1103 = vmul.f32 %v1101, 1.442695
    %v1104 = vpow.pop %v1103
    %v1105 = vmul.f32 %v1102, 1.442695
    %v1106 = vpow.pop %v1105
    %v1107 = vsel %vm306, %v1104, 0.0
    %1108 = vadd.xlane.f32.xlu0 %v1107
    %v1109 = vpop.xlane.xlu0 %1108
    %v1110 = vsel %vm306, %v1106, 0.0
    %1111 = vadd.xlane.f32.xlu0 %v1110
    %v1112 = vpop.xlane.xlu0 %1111
    %v1113 = vrcp.pop %v1109
    %v1114 = vrcp.pop %v1112
    %v1115 = vmul.f32 %v1104, %v1113
    %v1116 = vmul.f32 %v1106, %v1114
    %v1117 = vpack.c.bf16 %v1115, %v1115
    %v1118 = vpack.c.bf16 %v1116, %v1116
    %1119 = vrot.lane.b32.xlu0 %v301, 40
    %v1120 = vpop.permute.xlu0 %1119
    %v1122 = vsel %vm306, %v1117, 0
    %v1125 = vsel %vm433, %v1120, 0
    %1127 = vmatprep.subr.bf16.mxu0 0
    %1128 = vmatpush1.bf16.msra.mxu0 %v1125
    %1129 = vmatprep.subr.bf16.mxu0 0
    %1130 = vmatpush1.bf16.msra.mxu0 0
    %1131 = vmatprep.subr.bf16.mxu0 0
    %1132 = vmatpush1.bf16.msra.mxu0 0
    %1133 = vmatprep.subr.bf16.mxu0 0
    %1134 = vmatpush1.bf16.msra.mxu0 0
    %1135 = vmatprep.subr.bf16.mxu0 0
    %1136 = vmatpush1.bf16.msra.mxu0 0
    %1137 = vmatprep.subr.bf16.mxu0 0
    %1138 = vmatpush1.bf16.msra.mxu0 0
    %1139 = vmatprep.subr.bf16.mxu0 0
    %1140 = vmatpush1.bf16.msra.mxu0 0
    %1141 = vmatprep.subr.bf16.mxu0 0
    %1142 = vmatpush1.bf16.msra.mxu0 0
    %1143 = vmatprep.subr.bf16.mxu0 0
    %1144 = vmatpush1.bf16.msra.mxu0 0
    %1145 = vmatprep.subr.bf16.mxu0 0
    %1146 = vmatpush1.bf16.msra.mxu0 0
    %1147 = vmatprep.subr.bf16.mxu0 0
    %1148 = vmatpush1.bf16.msra.mxu0 0
    %1149 = vmatprep.subr.bf16.mxu0 0
    %1150 = vmatpush1.bf16.msra.mxu0 0
    %1151 = vmatprep.subr.bf16.mxu0 0
    %1152 = vmatpush1.bf16.msra.mxu0 0
    %1153 = vmatprep.subr.bf16.mxu0 0
    %1154 = vmatpush1.bf16.msra.mxu0 0
    %1155 = vmatprep.subr.bf16.mxu0 0
    %1156 = vmatpush1.bf16.msra.mxu0 0
    %1157 = vmatprep.subr.bf16.mxu0 0
    %1158 = vmatpush1.bf16.msra.mxu0 0
    %1159 = vmatprep.mubr.bf16.mxu0 0
    %1160 = vmatmul.mubr.bf16.gmra.mrb[0].mxu0 %v1122
    %v1161 = vpop.f32.mrb[0].mxu0
    %v1162 = vadd.f32 0.0, %v1161
    %v1163 = vpop.f32.mrb[0].mxu0
    %v1164 = vpop.f32.mrb[0].mxu0
    %v1165 = vpop.f32.mrb[0].mxu0
    %1166 = vdwg.mxu0
    %1167 = vrot.lane.b32.xlu0 %v302, 40
    %v1168 = vpop.permute.xlu0 %1167
    %v1170 = vsel %vm306, %v1118, 0
    %v1173 = vsel %vm433, %v1168, 0
    %1175 = vmatprep.subr.bf16.mxu0 0
    %1176 = vmatpush1.bf16.msra.mxu0 %v1173
    %1177 = vmatprep.subr.bf16.mxu0 0
    %1178 = vmatpush1.bf16.msra.mxu0 0
    %1179 = vmatprep.subr.bf16.mxu0 0
    %1180 = vmatpush1.bf16.msra.mxu0 0
    %1181 = vmatprep.subr.bf16.mxu0 0
    %1182 = vmatpush1.bf16.msra.mxu0 0
    %1183 = vmatprep.subr.bf16.mxu0 0
    %1184 = vmatpush1.bf16.msra.mxu0 0
    %1185 = vmatprep.subr.bf16.mxu0 0
    %1186 = vmatpush1.bf16.msra.mxu0 0
    %1187 = vmatprep.subr.bf16.mxu0 0
    %1188 = vmatpush1.bf16.msra.mxu0 0
    %1189 = vmatprep.subr.bf16.mxu0 0
    %1190 = vmatpush1.bf16.msra.mxu0 0
    %1191 = vmatprep.subr.bf16.mxu0 0
    %1192 = vmatpush1.bf16.msra.mxu0 0
    %1193 = vmatprep.subr.bf16.mxu0 0
    %1194 = vmatpush1.bf16.msra.mxu0 0
    %1195 = vmatprep.subr.bf16.mxu0 0
    %1196 = vmatpush1.bf16.msra.mxu0 0
    %1197 = vmatprep.subr.bf16.mxu0 0
    %1198 = vmatpush1.bf16.msra.mxu0 0
    %1199 = vmatprep.subr.bf16.mxu0 0
    %1200 = vmatpush1.bf16.msra.mxu0 0
    %1201 = vmatprep.subr.bf16.mxu0 0
    %1202 = vmatpush1.bf16.msra.mxu0 0
    %1203 = vmatprep.subr.bf16.mxu0 0
    %1204 = vmatpush1.bf16.msra.mxu0 0
    %1205 = vmatprep.subr.bf16.mxu0 0
    %1206 = vmatpush1.bf16.msra.mxu0 0
    %1207 = vmatprep.mubr.bf16.mxu0 0
    %1208 = vmatmul.mubr.bf16.gmra.mrb[0].mxu0 %v1170
    %v1209 = vpop.f32.mrb[0].mxu0
    %v1210 = vadd.f32 0.0, %v1209
    %v1211 = vpop.f32.mrb[0].mxu0
    %v1212 = vpop.f32.mrb[0].mxu0
    %v1213 = vpop.f32.mrb[0].mxu0
    %1214 = vdwg.mxu0
    %1217 = vrot.lane.b32.xlu0 %v1162, 24
    %v1218 = vpop.permute.xlu0 %1217
    %1219 = vrot.lane.b32.xlu0 %v1210, 24
    %v1220 = vpop.permute.xlu0 %1219
    %vm1223 = vcmask 261312
    %1224 = vst.msk [vmem:[#allocation2] sm:$0xff] %vm1223, %v1218
    %1225 = vst.msk [vmem:[#allocation2 + $0x8] sm:$0xff] %vm1223, %v1220
    %v1226 = vld [vmem:[#allocation2] sm:$0xff]
    %v1227 = vld [vmem:[#allocation2 + $0x8] sm:$0xff]
    %v1228 = vpack.c.bf16 %v1227, %v1226
    %v1229 = vld [vmem:[%s4] sm:$0xf]
    %v1230 = vld [vmem:[%s4 + $0x4] sm:$0xf]
    %v1231 = vld [vmem:[%s4 + $0x8] sm:$0xf]
    %v1232 = vld [vmem:[%s4 + $0xc] sm:$0xf]
    %v1233 = vld [vmem:[%s4 + $0x10] sm:$0xf]
    %v1234 = vld [vmem:[%s4 + $0x14] sm:$0xf]
    %v1235 = vld [vmem:[%s4 + $0x18] sm:$0xf]
    %v1236 = vld [vmem:[%s4 + $0x1c] sm:$0xf]
    %v1237 = vld [vmem:[%s4 + $0x20] sm:$0xf]
    %v1238 = vld [vmem:[%s4 + $0x24] sm:$0xf]
    %v1239 = vld [vmem:[%s4 + $0x28] sm:$0xf]
    %v1240 = vld [vmem:[%s4 + $0x2c] sm:$0xf]
    %v1241 = vld [vmem:[%s4 + $0x30] sm:$0xf]
    %v1242 = vld [vmem:[%s4 + $0x34] sm:$0xf]
    %v1243 = vld [vmem:[%s4 + $0x38] sm:$0xf]
    %v1244 = vld [vmem:[%s4 + $0x3c] sm:$0xf]
    %v1245 = vld [vmem:[%s5] sm:$0x1]
    %v1247 = vlaneseq
    %v1248 = vshrl.u32 %v1247, 7
    %v1249 = vsub.s32 0, %v1248
    %v1250 = vrot.slane %v1245, %v1249
    %v1268 = vunpack.c.l.b16 %v1229
    %v1269 = vunpack.c.l.b16 %v1230
    %v1270 = vunpack.c.l.b16 %v1231
    %v1271 = vunpack.c.l.b16 %v1232
    %v1272 = vunpack.c.l.b16 %v1233
    %v1273 = vunpack.c.l.b16 %v1234
    %v1274 = vunpack.c.l.b16 %v1235
    %v1275 = vunpack.c.l.b16 %v1236
    %v1276 = vunpack.c.l.b16 %v1237
    %v1277 = vunpack.c.l.b16 %v1238
    %v1278 = vunpack.c.l.b16 %v1239
    %v1279 = vunpack.c.l.b16 %v1240
    %v1280 = vunpack.c.l.b16 %v1241
    %v1281 = vunpack.c.l.b16 %v1242
    %v1282 = vunpack.c.l.b16 %v1243
    %v1283 = vunpack.c.l.b16 %v1244
    %v1284 = vpack.c.b16 %v1269, %v1268
    %v1285 = vpack.c.b16 %v1271, %v1270
    %v1286 = vpack.c.b16 %v1273, %v1272
    %v1287 = vpack.c.b16 %v1275, %v1274
    %v1288 = vpack.c.b16 %v1277, %v1276
    %v1289 = vpack.c.b16 %v1279, %v1278
    %v1290 = vpack.c.b16 %v1281, %v1280
    %v1291 = vpack.c.b16 %v1283, %v1282
    %v1293 = vsel %vm55, %v1228, 0
    %v1296 = vsel %vm55, %v1284, 0
    %v1299 = vsel %vm55, %v1285, 0
    %v1302 = vsel %vm55, %v1286, 0
    %v1305 = vsel %vm55, %v1287, 0
    %v1308 = vsel %vm55, %v1288, 0
    %v1311 = vsel %vm55, %v1289, 0
    %v1314 = vsel %vm55, %v1290, 0
    %v1317 = vsel %vm55, %v1291, 0
    %1319 = vmatprep.subr.bf16.mxu0 0
    %1320 = vmatpush1.bf16.xpose.msra.mxu0 %v1296
    %1321 = vmatprep.subr.bf16.mxu0 0
    %1322 = vmatpush1.bf16.xpose.msra.mxu0 %v1299
    %1323 = vmatprep.subr.bf16.mxu0 0
    %1324 = vmatpush1.bf16.xpose.msra.mxu0 %v1302
    %1325 = vmatprep.subr.bf16.mxu0 0
    %1326 = vmatpush1.bf16.xpose.msra.mxu0 %v1305
    %1327 = vmatprep.subr.bf16.mxu0 0
    %1328 = vmatpush1.bf16.xpose.msra.mxu0 %v1308
    %1329 = vmatprep.subr.bf16.mxu0 0
    %1330 = vmatpush1.bf16.xpose.msra.mxu0 %v1311
    %1331 = vmatprep.subr.bf16.mxu0 0
    %1332 = vmatpush1.bf16.xpose.msra.mxu0 %v1314
    %1333 = vmatprep.subr.bf16.mxu0 0
    %1334 = vmatpush1.bf16.xpose.msra.mxu0 %v1317
    %1335 = vmatprep.subr.bf16.mxu0 0
    %1336 = vmatpush1.bf16.xpose.msra.mxu0 0
    %1337 = vmatprep.subr.bf16.mxu0 0
    %1338 = vmatpush1.bf16.xpose.msra.mxu0 0
    %1339 = vmatprep.subr.bf16.mxu0 0
    %1340 = vmatpush1.bf16.xpose.msra.mxu0 0
    %1341 = vmatprep.subr.bf16.mxu0 0
    %1342 = vmatpush1.bf16.xpose.msra.mxu0 0
    %1343 = vmatprep.subr.bf16.mxu0 0
    %1344 = vmatpush1.bf16.xpose.msra.mxu0 0
    %1345 = vmatprep.subr.bf16.mxu0 0
    %1346 = vmatpush1.bf16.xpose.msra.mxu0 0
    %1347 = vmatprep.subr.bf16.mxu0 0
    %1348 = vmatpush1.bf16.xpose.msra.mxu0 0
    %1349 = vmatprep.subr.bf16.mxu0 0
    %1350 = vmatpush1.bf16.xpose.msra.mxu0 0
    %1351 = vmatprep.mubr.bf16.mxu0 0
    %1352 = vmatmul.mubr.bf16.gmra.mrb[0].mxu0 %v1293
    %v1353 = vpop.f32.mrb[0].mxu0
    %v1354 = vadd.f32 %v1250, %v1353
    %v1355 = vpop.f32.mrb[0].mxu0
    %v1356 = vpop.f32.mrb[0].mxu0
    %v1357 = vadd.f32 %v1250, %v1356
    %v1358 = vpop.f32.mrb[0].mxu0
    %1359 = vdwg.mxu0
    %1360 = vst [vmem:[#allocation3] sm:$0xff] %v1354
    %1361 = vst [vmem:[#allocation3 + $0x8] sm:$0xff] %v1357
    // Predicated region
    $region26: #{tpu_custom_call.1} parent=1 // pred_check
      _
    $region27: #{tpu_custom_call.1} parent=1 // pred_check_branch
      %1363 = sbr.rel (0) target = $region29
    $region28: #{tpu_custom_call.1} parent=1 // pred_region
      %s1365 = ssub.s32 256, 256
      %1366 = vsyncadd [#allocation4], %s1365
      %s1367 = sshll.u32 [#allocation3], 4
      %s1368 = int_to_ptr.vmem [resolvable:$true] %s1367
      %1373 = dma.vmem_to_hbm [thread:$0]  %s1368, 256, %s6, [#allocation4], 128, 128, 8
    $region29: #{tpu_custom_call.1} parent=1 // pred_fallthru
      _
    // Predicated region
    $region30: #{tpu_custom_call.1} parent=1 // pred_check
      _
    $region31: #{tpu_custom_call.1} parent=1 // pred_check_branch
      %1375 = sbr.rel (0) target = $region33
    $region32: #{tpu_custom_call.1} parent=1 // pred_region
      %1376 = dma.done [#allocation4], 256
    $region33: #{tpu_custom_call.1} parent=1 // pred_fallthru
      _
    %1377 = vsyncpa [#allocation4], 1

</llo_original>
